<compile_context>
chip_gen: v7x
topology: tpu7x:2x2x1
jax: 0.10.0
libtpu: 0.0.40
codegen_flags: <defaults>
</compile_context>

<pallas_src>
import functools

import jax
import jax.numpy as jnp
from jax.experimental import pallas as pl
from jax.experimental.pallas import tpu as pltpu

D_MODEL = 32
N_HEADS = 4
HEAD_DIM = D_MODEL // N_HEADS
EPS = 1e-5           # torch.nn.LayerNorm default
MASK_VALUE = -1e30   # finite "minus infinity"


def _layer_norm(x, gamma, beta):
    # x: (M, E); gamma/beta: (1, E).  Biased variance, like torch.nn.LayerNorm.
    mu = jnp.mean(x, axis=-1, keepdims=True)
    var = jnp.mean((x - mu) ** 2, axis=-1, keepdims=True)
    return (x - mu) * jax.lax.rsqrt(var + EPS) * gamma + beta


def transformer_block_kernel(q_ref, k_ref, v_ref, mask_ref,
                             gamma_ref, beta_ref,
                             w_in_ref, b_in_ref,
                             w_out_ref, b_out_ref,
                             o_ref, *, n_heads):
    E = q_ref.shape[-1]
    dh = E // n_heads
    mq = q_ref.shape[0]            # Lq * N (flattened query rows)
    mk = k_ref.shape[0]            # Lk * N (flattened key rows)

    gamma = gamma_ref[...]         # (1, E)
    beta = beta_ref[...]           # (1, E)

    # Pre-LayerNorm (shared params) on the flattened (rows, E) activations.
    qn = _layer_norm(q_ref[...], gamma, beta)   # (mq, E)
    kn = _layer_norm(k_ref[...], gamma, beta)   # (mk, E)
    vn = _layer_norm(v_ref[...], gamma, beta)   # (mk, E)

    # Fused QKV projection: single MXU push against the pre-transposed (E, 3E) weight.
    # The 1/sqrt(head_dim) scale is already folded into the Q columns and Q bias.
    x_stack = jnp.concatenate([qn, kn, vn], axis=0)                     # (mq+2mk, E)
    proj = jnp.dot(x_stack, w_in_ref[...],
                   preferred_element_type=jnp.float32)                  # (mq+2mk, 3E)
    b_in = b_in_ref[...]                                                # (1, 3E)
    q_all = proj[0:mq, 0:E] + b_in[:, 0:E]                              # (mq, E), scaled
    k_all = proj[mq:mq + mk, E:2 * E] + b_in[:, E:2 * E]                # (mk, E)
    v_all = proj[mq + mk:mq + 2 * mk, 2 * E:3 * E] + b_in[:, 2 * E:3 * E]

    mask_bias = mask_ref[...]      # (mq, mk): 0 where attendable, -1e30 otherwise
    w_out = w_out_ref[...]         # (E, E) pre-transposed output projection weight

    x = jnp.zeros((mq, E), jnp.float32)
    for h in range(n_heads):       # static unroll; heads live in the lane dim
        sl = slice(h * dh, (h + 1) * dh)
        qh = q_all[:, sl]
        kh = k_all[:, sl]
        vh = v_all[:, sl]
        # Scores: contract the head dim of both operands (no explicit transpose).
        s = jax.lax.dot_general(qh, kh, (((1,), (1,)), ((), ())),
                                preferred_element_type=jnp.float32)     # (mq, mk)
        s = s + mask_bias
        s = s - jnp.max(s, axis=-1, keepdims=True)
        p = jnp.exp(s)
        p = p * pl.reciprocal(jnp.sum(p, axis=-1, keepdims=True), approx=False)
        # TODO(synk): attn_dropout on attention probabilities treated as eval-mode identity.
        oh = jnp.dot(p, vh, preferred_element_type=jnp.float32)         # (mq, dh)
        # Fold the output projection in per head (eliminates the concat over heads).
        x = x + jnp.dot(oh, w_out[sl, :], preferred_element_type=jnp.float32)

    # TODO(synk): res_dropout on the residual branch treated as eval-mode identity.
    o_ref[...] = qn + x + b_out_ref[...]


@jax.jit
def transformer_block(query, key, value, params):
    """query/key/value: (L, N, E) float32 (PyTorch MultiheadAttention layout)."""
    lq, n, e = query.shape
    lk = key.shape[0]
    assert e == D_MODEL

    # (L, N, E) -> (L*N, E): row-major reshape, no transpose, no data movement.
    q2d = query.reshape(lq * n, e).astype(jnp.float32)
    k2d = key.reshape(lk * n, e).astype(jnp.float32)
    v2d = value.reshape(lk * n, e).astype(jnp.float32)

    # Additive attention mask on flattened row indices (row r = seq_pos * N + batch):
    # attendable iff same batch AND key position <= query position (causal).
    rq = jnp.arange(lq * n)
    rk = jnp.arange(lk * n)
    same_batch = (rq[:, None] % n) == (rk[None, :] % n)
    causal = (rk[None, :] // n) <= (rq[:, None] // n)
    mask_bias = jnp.where(same_batch & causal, 0.0, MASK_VALUE).astype(jnp.float32)

    # Host-side weight prep: pre-transpose, fuse QKV, fold 1/sqrt(head_dim) into Q.
    scale = 1.0 / (HEAD_DIM ** 0.5)
    w_in_t = params["in_proj_w"].T.astype(jnp.float32)            # (E, 3E) = [WqT|WkT|WvT]
    w_in_t = jnp.concatenate([w_in_t[:, :e] * scale, w_in_t[:, e:]], axis=1)
    b_in = params["in_proj_b"].reshape(1, 3 * e).astype(jnp.float32)
    b_in = jnp.concatenate([b_in[:, :e] * scale, b_in[:, e:]], axis=1)
    w_out_t = params["out_proj_w"].T.astype(jnp.float32)          # (E, E)
    b_out = params["out_proj_b"].reshape(1, e).astype(jnp.float32)
    gamma = params["ln_gamma"].reshape(1, e).astype(jnp.float32)
    beta = params["ln_beta"].reshape(1, e).astype(jnp.float32)

    kernel = functools.partial(transformer_block_kernel, n_heads=N_HEADS)
    vmem_spec = pl.BlockSpec(memory_space=pltpu.MemorySpace.VMEM)
    out2d = pl.pallas_call(
        kernel,
        out_shape=jax.ShapeDtypeStruct((lq * n, e), jnp.float32),
        in_specs=[vmem_spec] * 10,
        out_specs=vmem_spec,
    )(q2d, k2d, v2d, mask_bias, gamma, beta, w_in_t, b_in, w_out_t, b_out)

    return out2d.reshape(lq, n, e)


def reference(query, key, value, p):
    """Pure-JAX reference mirroring the PyTorch forward (eval mode)."""
    E = D_MODEL

    def ln(x):
        mu = x.mean(-1, keepdims=True)
        var = ((x - mu) ** 2).mean(-1, keepdims=True)
        return (x - mu) / jnp.sqrt(var + EPS) * p["ln_gamma"] + p["ln_beta"]

    qn, kn, vn = ln(query), ln(key), ln(value)     # (L, N, E)
    Lq, N, _ = query.shape
    Lk = key.shape[0]
    in_w, in_b = p["in_proj_w"], p["in_proj_b"]
    Q = qn @ in_w[:E].T + in_b[:E]
    K = kn @ in_w[E:2 * E].T + in_b[E:2 * E]
    V = vn @ in_w[2 * E:].T + in_b[2 * E:]

    def heads(x, L):
        return x.reshape(L, N, N_HEADS, HEAD_DIM).transpose(1, 2, 0, 3)

    Qh, Kh, Vh = heads(Q, Lq), heads(K, Lk), heads(V, Lk)
    s = jnp.einsum("nhqd,nhkd->nhqk", Qh, Kh) / jnp.sqrt(HEAD_DIM)
    rows = jnp.arange(Lq)[:, None]
    cols = jnp.arange(Lk)[None, :]
    s = jnp.where(cols > rows, -jnp.inf, s)
    pr = jax.nn.softmax(s, axis=-1)
    o = jnp.einsum("nhqk,nhkd->nhqd", pr, Vh)       # (N, H, Lq, Dh)
    o = o.transpose(2, 0, 1, 3).reshape(Lq, N, E)
    x = o @ p["out_proj_w"].T + p["out_proj_b"]
    return qn + x


if __name__ == "__main__":
    key0 = jax.random.PRNGKey(0)
    ks = jax.random.split(key0, 10)

    L, N, E = 8, 2, D_MODEL   # seq=8, batch=2, d_model=32, n_heads=4

    query = jax.random.normal(ks[0], (L, N, E), jnp.float32)
    key_in = jax.random.normal(ks[1], (L, N, E), jnp.float32)
    value = jax.random.normal(ks[2], (L, N, E), jnp.float32)

    params = {
        "ln_gamma": 1.0 + 0.1 * jax.random.normal(ks[3], (E,), jnp.float32),
        "ln_beta": 0.1 * jax.random.normal(ks[4], (E,), jnp.float32),
        "in_proj_w": 0.05 * jax.random.normal(ks[5], (3 * E, E), jnp.float32),
        "in_proj_b": 0.05 * jax.random.normal(ks[6], (3 * E,), jnp.float32),
        "out_proj_w": 0.05 * jax.random.normal(ks[7], (E, E), jnp.float32),
        "out_proj_b": 0.05 * jax.random.normal(ks[8], (E,), jnp.float32),
    }

    out = transformer_block(query, key_in, value, params)
    out = jax.block_until_ready(out)

    ref = reference(query, key_in, value, params)
    assert out.shape == (L, N, E)
    assert jnp.allclose(out, ref, atol=1e-4, rtol=1e-4), (
        f"max abs err {jnp.max(jnp.abs(out - ref))}")

    print("KERNEL_OK")
</pallas_src>

<mosaic_0001>
module attributes {stable_mosaic.version = 11 : i64} {
  func.func @transformer_block_kernel(%arg0: memref<16x32xf32, #tpu.memory_space<vmem>>, %arg1: memref<16x32xf32, #tpu.memory_space<vmem>>, %arg2: memref<16x32xf32, #tpu.memory_space<vmem>>, %arg3: memref<16x16xf32, #tpu.memory_space<vmem>>, %arg4: memref<1x32xf32, #tpu.memory_space<vmem>>, %arg5: memref<1x32xf32, #tpu.memory_space<vmem>>, %arg6: memref<32x96xf32, #tpu.memory_space<vmem>>, %arg7: memref<1x96xf32, #tpu.memory_space<vmem>>, %arg8: memref<32x32xf32, #tpu.memory_space<vmem>>, %arg9: memref<1x32xf32, #tpu.memory_space<vmem>>, %arg10: memref<16x32xf32, #tpu.memory_space<vmem>>) attributes {dimension_semantics = [], scalar_prefetch = 0 : i64, scratch_operands = 0 : i64, tpu.core_type = #tpu.core_type<tc>} {
    %c0 = arith.constant 0 : index
    %c0_0 = arith.constant 0 : index
    %0 = vector.load %arg4[%c0, %c0_0] : memref<1x32xf32, #tpu.memory_space<vmem>>, vector<1x32xf32>
    %c0_1 = arith.constant 0 : index
    %c0_2 = arith.constant 0 : index
    %1 = vector.load %arg5[%c0_1, %c0_2] : memref<1x32xf32, #tpu.memory_space<vmem>>, vector<1x32xf32>
    %c0_3 = arith.constant 0 : index
    %c0_4 = arith.constant 0 : index
    %2 = vector.load %arg0[%c0_3, %c0_4] : memref<16x32xf32, #tpu.memory_space<vmem>>, vector<16x32xf32>
    %cst = arith.constant dense<0.000000e+00> : vector<16xf32>
    %3 = vector.multi_reduction <add>, %2, %cst [1] : vector<16x32xf32> to vector<16xf32>
    %4 = vector.shape_cast %3 : vector<16xf32> to vector<16x1xf32>
    %cst_5 = arith.constant 3.200000e+01 : f32
    %5 = vector.broadcast %cst_5 : f32 to vector<16x1xf32>
    %6 = arith.divf %4, %5 : vector<16x1xf32>
    %7 = vector.broadcast %6 : vector<16x1xf32> to vector<16x32xf32>
    %8 = arith.subf %2, %7 : vector<16x32xf32>
    %9 = arith.mulf %8, %8 : vector<16x32xf32>
    %cst_6 = arith.constant dense<0.000000e+00> : vector<16xf32>
    %10 = vector.multi_reduction <add>, %9, %cst_6 [1] : vector<16x32xf32> to vector<16xf32>
    %11 = vector.shape_cast %10 : vector<16xf32> to vector<16x1xf32>
    %cst_7 = arith.constant 3.200000e+01 : f32
    %12 = vector.broadcast %cst_7 : f32 to vector<16x1xf32>
    %13 = arith.divf %11, %12 : vector<16x1xf32>
    %14 = vector.broadcast %6 : vector<16x1xf32> to vector<16x32xf32>
    %15 = arith.subf %2, %14 : vector<16x32xf32>
    %cst_8 = arith.constant 9.99999974E-6 : f32
    %16 = vector.broadcast %cst_8 : f32 to vector<16x1xf32>
    %17 = arith.addf %13, %16 : vector<16x1xf32>
    %18 = math.rsqrt %17 : vector<16x1xf32>
    %19 = vector.broadcast %18 : vector<16x1xf32> to vector<16x32xf32>
    %20 = arith.mulf %15, %19 : vector<16x32xf32>
    %21 = vector.broadcast %0 : vector<1x32xf32> to vector<16x32xf32>
    %22 = arith.mulf %20, %21 : vector<16x32xf32>
    %23 = vector.broadcast %1 : vector<1x32xf32> to vector<16x32xf32>
    %24 = arith.addf %22, %23 : vector<16x32xf32>
    %c0_9 = arith.constant 0 : index
    %c0_10 = arith.constant 0 : index
    %25 = vector.load %arg1[%c0_9, %c0_10] : memref<16x32xf32, #tpu.memory_space<vmem>>, vector<16x32xf32>
    %cst_11 = arith.constant dense<0.000000e+00> : vector<16xf32>
    %26 = vector.multi_reduction <add>, %25, %cst_11 [1] : vector<16x32xf32> to vector<16xf32>
    %27 = vector.shape_cast %26 : vector<16xf32> to vector<16x1xf32>
    %cst_12 = arith.constant 3.200000e+01 : f32
    %28 = vector.broadcast %cst_12 : f32 to vector<16x1xf32>
    %29 = arith.divf %27, %28 : vector<16x1xf32>
    %30 = vector.broadcast %29 : vector<16x1xf32> to vector<16x32xf32>
    %31 = arith.subf %25, %30 : vector<16x32xf32>
    %32 = arith.mulf %31, %31 : vector<16x32xf32>
    %cst_13 = arith.constant dense<0.000000e+00> : vector<16xf32>
    %33 = vector.multi_reduction <add>, %32, %cst_13 [1] : vector<16x32xf32> to vector<16xf32>
    %34 = vector.shape_cast %33 : vector<16xf32> to vector<16x1xf32>
    %cst_14 = arith.constant 3.200000e+01 : f32
    %35 = vector.broadcast %cst_14 : f32 to vector<16x1xf32>
    %36 = arith.divf %34, %35 : vector<16x1xf32>
    %37 = vector.broadcast %29 : vector<16x1xf32> to vector<16x32xf32>
    %38 = arith.subf %25, %37 : vector<16x32xf32>
    %cst_15 = arith.constant 9.99999974E-6 : f32
    %39 = vector.broadcast %cst_15 : f32 to vector<16x1xf32>
    %40 = arith.addf %36, %39 : vector<16x1xf32>
    %41 = math.rsqrt %40 : vector<16x1xf32>
    %42 = vector.broadcast %41 : vector<16x1xf32> to vector<16x32xf32>
    %43 = arith.mulf %38, %42 : vector<16x32xf32>
    %44 = vector.broadcast %0 : vector<1x32xf32> to vector<16x32xf32>
    %45 = arith.mulf %43, %44 : vector<16x32xf32>
    %46 = vector.broadcast %1 : vector<1x32xf32> to vector<16x32xf32>
    %47 = arith.addf %45, %46 : vector<16x32xf32>
    %c0_16 = arith.constant 0 : index
    %c0_17 = arith.constant 0 : index
    %48 = vector.load %arg2[%c0_16, %c0_17] : memref<16x32xf32, #tpu.memory_space<vmem>>, vector<16x32xf32>
    %cst_18 = arith.constant dense<0.000000e+00> : vector<16xf32>
    %49 = vector.multi_reduction <add>, %48, %cst_18 [1] : vector<16x32xf32> to vector<16xf32>
    %50 = vector.shape_cast %49 : vector<16xf32> to vector<16x1xf32>
    %cst_19 = arith.constant 3.200000e+01 : f32
    %51 = vector.broadcast %cst_19 : f32 to vector<16x1xf32>
    %52 = arith.divf %50, %51 : vector<16x1xf32>
    %53 = vector.broadcast %52 : vector<16x1xf32> to vector<16x32xf32>
    %54 = arith.subf %48, %53 : vector<16x32xf32>
    %55 = arith.mulf %54, %54 : vector<16x32xf32>
    %cst_20 = arith.constant dense<0.000000e+00> : vector<16xf32>
    %56 = vector.multi_reduction <add>, %55, %cst_20 [1] : vector<16x32xf32> to vector<16xf32>
    %57 = vector.shape_cast %56 : vector<16xf32> to vector<16x1xf32>
    %cst_21 = arith.constant 3.200000e+01 : f32
    %58 = vector.broadcast %cst_21 : f32 to vector<16x1xf32>
    %59 = arith.divf %57, %58 : vector<16x1xf32>
    %60 = vector.broadcast %52 : vector<16x1xf32> to vector<16x32xf32>
    %61 = arith.subf %48, %60 : vector<16x32xf32>
    %cst_22 = arith.constant 9.99999974E-6 : f32
    %62 = vector.broadcast %cst_22 : f32 to vector<16x1xf32>
    %63 = arith.addf %59, %62 : vector<16x1xf32>
    %64 = math.rsqrt %63 : vector<16x1xf32>
    %65 = vector.broadcast %64 : vector<16x1xf32> to vector<16x32xf32>
    %66 = arith.mulf %61, %65 : vector<16x32xf32>
    %67 = vector.broadcast %0 : vector<1x32xf32> to vector<16x32xf32>
    %68 = arith.mulf %66, %67 : vector<16x32xf32>
    %69 = vector.broadcast %1 : vector<1x32xf32> to vector<16x32xf32>
    %70 = arith.addf %68, %69 : vector<16x32xf32>
    %71 = tpu.concatenate %24, %47, %70 in 0 : vector<16x32xf32>, vector<16x32xf32>, vector<16x32xf32> -> vector<48x32xf32>
    %c0_23 = arith.constant 0 : index
    %c0_24 = arith.constant 0 : index
    %72 = vector.load %arg6[%c0_23, %c0_24] : memref<32x96xf32, #tpu.memory_space<vmem>>, vector<32x96xf32>
    %cst_25 = arith.constant dense<0.000000e+00> : vector<48x96xf32>
    %73 = tpu.matmul %71, %72, %cst_25 {dimension_numbers = #tpu.dot_dimension_numbers<[1], [0], [0], [1], [0, 0, 1, 1], [], []>} : vector<48x32xf32>, vector<32x96xf32>, vector<48x96xf32> -> vector<48x96xf32>
    %c0_26 = arith.constant 0 : index
    %c0_27 = arith.constant 0 : index
    %74 = vector.load %arg7[%c0_26, %c0_27] : memref<1x96xf32, #tpu.memory_space<vmem>>, vector<1x96xf32>
    %75 = vector.extract_strided_slice %73 {offsets = [0, 0], sizes = [16, 32], strides = [1, 1]} : vector<48x96xf32> to vector<16x32xf32>
    %76 = vector.extract_strided_slice %74 {offsets = [0, 0], sizes = [1, 32], strides = [1, 1]} : vector<1x96xf32> to vector<1x32xf32>
    %77 = vector.broadcast %76 : vector<1x32xf32> to vector<16x32xf32>
    %78 = arith.addf %75, %77 : vector<16x32xf32>
    %79 = vector.extract_strided_slice %73 {offsets = [16, 32], sizes = [16, 32], strides = [1, 1]} : vector<48x96xf32> to vector<16x32xf32>
    %80 = vector.extract_strided_slice %74 {offsets = [0, 32], sizes = [1, 32], strides = [1, 1]} : vector<1x96xf32> to vector<1x32xf32>
    %81 = vector.broadcast %80 : vector<1x32xf32> to vector<16x32xf32>
    %82 = arith.addf %79, %81 : vector<16x32xf32>
    %83 = vector.extract_strided_slice %73 {offsets = [32, 64], sizes = [16, 32], strides = [1, 1]} : vector<48x96xf32> to vector<16x32xf32>
    %84 = vector.extract_strided_slice %74 {offsets = [0, 64], sizes = [1, 32], strides = [1, 1]} : vector<1x96xf32> to vector<1x32xf32>
    %85 = vector.broadcast %84 : vector<1x32xf32> to vector<16x32xf32>
    %86 = arith.addf %83, %85 : vector<16x32xf32>
    %c0_28 = arith.constant 0 : index
    %c0_29 = arith.constant 0 : index
    %87 = vector.load %arg3[%c0_28, %c0_29] : memref<16x16xf32, #tpu.memory_space<vmem>>, vector<16x16xf32>
    %c0_30 = arith.constant 0 : index
    %c0_31 = arith.constant 0 : index
    %88 = vector.load %arg8[%c0_30, %c0_31] : memref<32x32xf32, #tpu.memory_space<vmem>>, vector<32x32xf32>
    %cst_32 = arith.constant 0.000000e+00 : f32
    %89 = vector.broadcast %cst_32 : f32 to vector<16x32xf32>
    %90 = vector.extract_strided_slice %78 {offsets = [0, 0], sizes = [16, 8], strides = [1, 1]} : vector<16x32xf32> to vector<16x8xf32>
    %91 = vector.extract_strided_slice %82 {offsets = [0, 0], sizes = [16, 8], strides = [1, 1]} : vector<16x32xf32> to vector<16x8xf32>
    %92 = vector.extract_strided_slice %86 {offsets = [0, 0], sizes = [16, 8], strides = [1, 1]} : vector<16x32xf32> to vector<16x8xf32>
    %cst_33 = arith.constant dense<0.000000e+00> : vector<16x16xf32>
    %93 = tpu.matmul %90, %91, %cst_33 {dimension_numbers = #tpu.dot_dimension_numbers<[1], [1], [0], [0], [0, 0, 1, 0], [], []>} : vector<16x8xf32>, vector<16x8xf32>, vector<16x16xf32> -> vector<16x16xf32>
    %94 = arith.addf %93, %87 : vector<16x16xf32>
    %cst_34 = arith.constant dense<0xFF800000> : vector<16xf32>
    %95 = vector.multi_reduction <maximumf>, %94, %cst_34 [1] : vector<16x16xf32> to vector<16xf32>
    %96 = vector.shape_cast %95 : vector<16xf32> to vector<16x1xf32>
    %97 = vector.broadcast %96 : vector<16x1xf32> to vector<16x16xf32>
    %98 = arith.subf %94, %97 : vector<16x16xf32>
    %99 = math.exp %98 : vector<16x16xf32>
    %cst_35 = arith.constant dense<0.000000e+00> : vector<16xf32>
    %100 = vector.multi_reduction <add>, %99, %cst_35 [1] : vector<16x16xf32> to vector<16xf32>
    %101 = vector.shape_cast %100 : vector<16xf32> to vector<16x1xf32>
    %102 = tpu.reciprocal %101 : vector<16x1xf32> -> vector<16x1xf32>
    %103 = vector.broadcast %102 : vector<16x1xf32> to vector<16x16xf32>
    %104 = arith.mulf %99, %103 : vector<16x16xf32>
    %cst_36 = arith.constant dense<0.000000e+00> : vector<16x8xf32>
    %105 = tpu.matmul %104, %92, %cst_36 {dimension_numbers = #tpu.dot_dimension_numbers<[1], [0], [0], [1], [0, 0, 1, 1], [], []>} : vector<16x16xf32>, vector<16x8xf32>, vector<16x8xf32> -> vector<16x8xf32>
    %106 = vector.extract_strided_slice %88 {offsets = [0, 0], sizes = [8, 32], strides = [1, 1]} : vector<32x32xf32> to vector<8x32xf32>
    %cst_37 = arith.constant dense<0.000000e+00> : vector<16x32xf32>
    %107 = tpu.matmul %105, %106, %cst_37 {dimension_numbers = #tpu.dot_dimension_numbers<[1], [0], [0], [1], [0, 0, 1, 1], [], []>} : vector<16x8xf32>, vector<8x32xf32>, vector<16x32xf32> -> vector<16x32xf32>
    %108 = arith.addf %89, %107 : vector<16x32xf32>
    %109 = vector.extract_strided_slice %78 {offsets = [0, 8], sizes = [16, 8], strides = [1, 1]} : vector<16x32xf32> to vector<16x8xf32>
    %110 = vector.extract_strided_slice %82 {offsets = [0, 8], sizes = [16, 8], strides = [1, 1]} : vector<16x32xf32> to vector<16x8xf32>
    %111 = vector.extract_strided_slice %86 {offsets = [0, 8], sizes = [16, 8], strides = [1, 1]} : vector<16x32xf32> to vector<16x8xf32>
    %cst_38 = arith.constant dense<0.000000e+00> : vector<16x16xf32>
    %112 = tpu.matmul %109, %110, %cst_38 {dimension_numbers = #tpu.dot_dimension_numbers<[1], [1], [0], [0], [0, 0, 1, 0], [], []>} : vector<16x8xf32>, vector<16x8xf32>, vector<16x16xf32> -> vector<16x16xf32>
    %113 = arith.addf %112, %87 : vector<16x16xf32>
    %cst_39 = arith.constant dense<0xFF800000> : vector<16xf32>
    %114 = vector.multi_reduction <maximumf>, %113, %cst_39 [1] : vector<16x16xf32> to vector<16xf32>
    %115 = vector.shape_cast %114 : vector<16xf32> to vector<16x1xf32>
    %116 = vector.broadcast %115 : vector<16x1xf32> to vector<16x16xf32>
    %117 = arith.subf %113, %116 : vector<16x16xf32>
    %118 = math.exp %117 : vector<16x16xf32>
    %cst_40 = arith.constant dense<0.000000e+00> : vector<16xf32>
    %119 = vector.multi_reduction <add>, %118, %cst_40 [1] : vector<16x16xf32> to vector<16xf32>
    %120 = vector.shape_cast %119 : vector<16xf32> to vector<16x1xf32>
    %121 = tpu.reciprocal %120 : vector<16x1xf32> -> vector<16x1xf32>
    %122 = vector.broadcast %121 : vector<16x1xf32> to vector<16x16xf32>
    %123 = arith.mulf %118, %122 : vector<16x16xf32>
    %cst_41 = arith.constant dense<0.000000e+00> : vector<16x8xf32>
    %124 = tpu.matmul %123, %111, %cst_41 {dimension_numbers = #tpu.dot_dimension_numbers<[1], [0], [0], [1], [0, 0, 1, 1], [], []>} : vector<16x16xf32>, vector<16x8xf32>, vector<16x8xf32> -> vector<16x8xf32>
    %125 = vector.extract_strided_slice %88 {offsets = [8, 0], sizes = [8, 32], strides = [1, 1]} : vector<32x32xf32> to vector<8x32xf32>
    %cst_42 = arith.constant dense<0.000000e+00> : vector<16x32xf32>
    %126 = tpu.matmul %124, %125, %cst_42 {dimension_numbers = #tpu.dot_dimension_numbers<[1], [0], [0], [1], [0, 0, 1, 1], [], []>} : vector<16x8xf32>, vector<8x32xf32>, vector<16x32xf32> -> vector<16x32xf32>
    %127 = arith.addf %108, %126 : vector<16x32xf32>
    %128 = vector.extract_strided_slice %78 {offsets = [0, 16], sizes = [16, 8], strides = [1, 1]} : vector<16x32xf32> to vector<16x8xf32>
    %129 = vector.extract_strided_slice %82 {offsets = [0, 16], sizes = [16, 8], strides = [1, 1]} : vector<16x32xf32> to vector<16x8xf32>
    %130 = vector.extract_strided_slice %86 {offsets = [0, 16], sizes = [16, 8], strides = [1, 1]} : vector<16x32xf32> to vector<16x8xf32>
    %cst_43 = arith.constant dense<0.000000e+00> : vector<16x16xf32>
    %131 = tpu.matmul %128, %129, %cst_43 {dimension_numbers = #tpu.dot_dimension_numbers<[1], [1], [0], [0], [0, 0, 1, 0], [], []>} : vector<16x8xf32>, vector<16x8xf32>, vector<16x16xf32> -> vector<16x16xf32>
    %132 = arith.addf %131, %87 : vector<16x16xf32>
    %cst_44 = arith.constant dense<0xFF800000> : vector<16xf32>
    %133 = vector.multi_reduction <maximumf>, %132, %cst_44 [1] : vector<16x16xf32> to vector<16xf32>
    %134 = vector.shape_cast %133 : vector<16xf32> to vector<16x1xf32>
    %135 = vector.broadcast %134 : vector<16x1xf32> to vector<16x16xf32>
    %136 = arith.subf %132, %135 : vector<16x16xf32>
    %137 = math.exp %136 : vector<16x16xf32>
    %cst_45 = arith.constant dense<0.000000e+00> : vector<16xf32>
    %138 = vector.multi_reduction <add>, %137, %cst_45 [1] : vector<16x16xf32> to vector<16xf32>
    %139 = vector.shape_cast %138 : vector<16xf32> to vector<16x1xf32>
    %140 = tpu.reciprocal %139 : vector<16x1xf32> -> vector<16x1xf32>
    %141 = vector.broadcast %140 : vector<16x1xf32> to vector<16x16xf32>
    %142 = arith.mulf %137, %141 : vector<16x16xf32>
    %cst_46 = arith.constant dense<0.000000e+00> : vector<16x8xf32>
    %143 = tpu.matmul %142, %130, %cst_46 {dimension_numbers = #tpu.dot_dimension_numbers<[1], [0], [0], [1], [0, 0, 1, 1], [], []>} : vector<16x16xf32>, vector<16x8xf32>, vector<16x8xf32> -> vector<16x8xf32>
    %144 = vector.extract_strided_slice %88 {offsets = [16, 0], sizes = [8, 32], strides = [1, 1]} : vector<32x32xf32> to vector<8x32xf32>
    %cst_47 = arith.constant dense<0.000000e+00> : vector<16x32xf32>
    %145 = tpu.matmul %143, %144, %cst_47 {dimension_numbers = #tpu.dot_dimension_numbers<[1], [0], [0], [1], [0, 0, 1, 1], [], []>} : vector<16x8xf32>, vector<8x32xf32>, vector<16x32xf32> -> vector<16x32xf32>
    %146 = arith.addf %127, %145 : vector<16x32xf32>
    %147 = vector.extract_strided_slice %78 {offsets = [0, 24], sizes = [16, 8], strides = [1, 1]} : vector<16x32xf32> to vector<16x8xf32>
    %148 = vector.extract_strided_slice %82 {offsets = [0, 24], sizes = [16, 8], strides = [1, 1]} : vector<16x32xf32> to vector<16x8xf32>
    %149 = vector.extract_strided_slice %86 {offsets = [0, 24], sizes = [16, 8], strides = [1, 1]} : vector<16x32xf32> to vector<16x8xf32>
    %cst_48 = arith.constant dense<0.000000e+00> : vector<16x16xf32>
    %150 = tpu.matmul %147, %148, %cst_48 {dimension_numbers = #tpu.dot_dimension_numbers<[1], [1], [0], [0], [0, 0, 1, 0], [], []>} : vector<16x8xf32>, vector<16x8xf32>, vector<16x16xf32> -> vector<16x16xf32>
    %151 = arith.addf %150, %87 : vector<16x16xf32>
    %cst_49 = arith.constant dense<0xFF800000> : vector<16xf32>
    %152 = vector.multi_reduction <maximumf>, %151, %cst_49 [1] : vector<16x16xf32> to vector<16xf32>
    %153 = vector.shape_cast %152 : vector<16xf32> to vector<16x1xf32>
    %154 = vector.broadcast %153 : vector<16x1xf32> to vector<16x16xf32>
    %155 = arith.subf %151, %154 : vector<16x16xf32>
    %156 = math.exp %155 : vector<16x16xf32>
    %cst_50 = arith.constant dense<0.000000e+00> : vector<16xf32>
    %157 = vector.multi_reduction <add>, %156, %cst_50 [1] : vector<16x16xf32> to vector<16xf32>
    %158 = vector.shape_cast %157 : vector<16xf32> to vector<16x1xf32>
    %159 = tpu.reciprocal %158 : vector<16x1xf32> -> vector<16x1xf32>
    %160 = vector.broadcast %159 : vector<16x1xf32> to vector<16x16xf32>
    %161 = arith.mulf %156, %160 : vector<16x16xf32>
    %cst_51 = arith.constant dense<0.000000e+00> : vector<16x8xf32>
    %162 = tpu.matmul %161, %149, %cst_51 {dimension_numbers = #tpu.dot_dimension_numbers<[1], [0], [0], [1], [0, 0, 1, 1], [], []>} : vector<16x16xf32>, vector<16x8xf32>, vector<16x8xf32> -> vector<16x8xf32>
    %163 = vector.extract_strided_slice %88 {offsets = [24, 0], sizes = [8, 32], strides = [1, 1]} : vector<32x32xf32> to vector<8x32xf32>
    %cst_52 = arith.constant dense<0.000000e+00> : vector<16x32xf32>
    %164 = tpu.matmul %162, %163, %cst_52 {dimension_numbers = #tpu.dot_dimension_numbers<[1], [0], [0], [1], [0, 0, 1, 1], [], []>} : vector<16x8xf32>, vector<8x32xf32>, vector<16x32xf32> -> vector<16x32xf32>
    %165 = arith.addf %146, %164 : vector<16x32xf32>
    %166 = arith.addf %24, %165 : vector<16x32xf32>
    %c0_53 = arith.constant 0 : index
    %c0_54 = arith.constant 0 : index
    %167 = vector.load %arg9[%c0_53, %c0_54] : memref<1x32xf32, #tpu.memory_space<vmem>>, vector<1x32xf32>
    %168 = vector.broadcast %167 : vector<1x32xf32> to vector<16x32xf32>
    %169 = arith.addf %166, %168 : vector<16x32xf32>
    %c0_55 = arith.constant 0 : index
    %c0_56 = arith.constant 0 : index
    %170 = vector.load %arg10[%c0_55, %c0_56] : memref<16x32xf32, #tpu.memory_space<vmem>>, vector<16x32xf32>
    tpu.vector_store %arg10[%c0_55, %c0_56], %169 {strides = array<i32>} : memref<16x32xf32, #tpu.memory_space<vmem>>, vector<16x32xf32>,
    return
  }
}

</mosaic_0001>

<llo_original>
// kernel: transformer_block.1
$region0: #{transformer_block.1}
  #allocation0 [shape = 'u32[]', space=smem, size = 0x4, offset = 0x4, fixed_abs, tag = 'smem constant byte address 0x4 - core index']
  #allocation1 [shape = 'u32[144,128]{1,0:T(1,128)}', space=vmem, size = 0x12000, scoped, tag = 'internal scratch']
  %s0 = inlined_call_operand.vmem [shape: f32[16,32], index: 0, kind: input, shape index: {}]
  %s1 = inlined_call_operand.vmem [shape: f32[16,32], index: 1, kind: input, shape index: {}]
  %s2 = inlined_call_operand.vmem [shape: f32[16,32], index: 2, kind: input, shape index: {}]
  %s3 = inlined_call_operand.vmem [shape: f32[16,16], index: 3, kind: input, shape index: {}]
  %s4 = inlined_call_operand.vmem [shape: f32[1,32], index: 4, kind: input, shape index: {}]
  %s5 = inlined_call_operand.vmem [shape: f32[1,32], index: 5, kind: input, shape index: {}]
  %s6 = inlined_call_operand.vmem [shape: f32[32,96], index: 6, kind: input, shape index: {}]
  %s7 = inlined_call_operand.vmem [shape: f32[1,96], index: 7, kind: input, shape index: {}]
  %s8 = inlined_call_operand.vmem [shape: f32[32,32], index: 8, kind: input, shape index: {}]
  %s9 = inlined_call_operand.vmem [shape: f32[1,32], index: 9, kind: input, shape index: {}]
  %s10 = inlined_call_operand.hbm [shape: f32[16,32], index: 10, kind: output, shape index: {}]
  %s11 = sld [smem:[#allocation0]]
  $region50: #{transformer_block.1} parent=0
    _
  %s13 = ssub.s32 1, %s11
  %s14 = scalar_select 0, %s13, %s11
  $region1: #{transformer_block.1} parent=0
    #allocation2 [shape = 'u8[8192]{0}', space=vmem, size = 0x2000, scoped, tag = 'output window, operand 0, single buffered']
    #allocation3 [shape = 's32[1]{0}', space=sflag, size = 0x4, scoped, tag = 'scoped memory for transformer_block.1']
    %15 = vsyncpa [#allocation3], 0
    // Predicated region
    $region2: #{transformer_block.1} parent=1 // pred_check
      _
    $region3: #{transformer_block.1} parent=1 // pred_check_branch
      %17 = sbr.rel (0) target = $region5
    $region4: #{transformer_block.1} parent=1 // pred_region
      _
    $region5: #{transformer_block.1} parent=1 // pred_fallthru
      _
    // Predicated region
    $region6: #{transformer_block.1} parent=1 // pred_check
      _
    $region7: #{transformer_block.1} parent=1 // pred_check_branch
      %19 = sbr.rel (0) target = $region9
    $region8: #{transformer_block.1} parent=1 // pred_region
      _
    $region9: #{transformer_block.1} parent=1 // pred_fallthru
      _
    // Predicated region
    $region10: #{transformer_block.1} parent=1 // pred_check
      _
    $region11: #{transformer_block.1} parent=1 // pred_check_branch
      %21 = sbr.rel (0) target = $region13
    $region12: #{transformer_block.1} parent=1 // pred_region
      _
    $region13: #{transformer_block.1} parent=1 // pred_fallthru
      _
    // Predicated region
    $region14: #{transformer_block.1} parent=1 // pred_check
      _
    $region15: #{transformer_block.1} parent=1 // pred_check_branch
      %23 = sbr.rel (0) target = $region17
    $region16: #{transformer_block.1} parent=1 // pred_region
      _
    $region17: #{transformer_block.1} parent=1 // pred_fallthru
      _
    // Predicated region
    $region18: #{transformer_block.1} parent=1 // pred_check
      _
    $region19: #{transformer_block.1} parent=1 // pred_check_branch
      %25 = sbr.rel (0) target = $region21
    $region20: #{transformer_block.1} parent=1 // pred_region
      _
    $region21: #{transformer_block.1} parent=1 // pred_fallthru
      _
    // Predicated region
    $region22: #{transformer_block.1} parent=1 // pred_check
      _
    $region23: #{transformer_block.1} parent=1 // pred_check_branch
      %27 = sbr.rel (0) target = $region25
    $region24: #{transformer_block.1} parent=1 // pred_region
      _
    $region25: #{transformer_block.1} parent=1 // pred_fallthru
      _
    // Predicated region
    $region26: #{transformer_block.1} parent=1 // pred_check
      _
    $region27: #{transformer_block.1} parent=1 // pred_check_branch
      %29 = sbr.rel (0) target = $region29
    $region28: #{transformer_block.1} parent=1 // pred_region
      _
    $region29: #{transformer_block.1} parent=1 // pred_fallthru
      _
    // Predicated region
    $region30: #{transformer_block.1} parent=1 // pred_check
      _
    $region31: #{transformer_block.1} parent=1 // pred_check_branch
      %31 = sbr.rel (0) target = $region33
    $region32: #{transformer_block.1} parent=1 // pred_region
      _
    $region33: #{transformer_block.1} parent=1 // pred_fallthru
      _
    // Predicated region
    $region34: #{transformer_block.1} parent=1 // pred_check
      _
    $region35: #{transformer_block.1} parent=1 // pred_check_branch
      %33 = sbr.rel (0) target = $region37
    $region36: #{transformer_block.1} parent=1 // pred_region
      _
    $region37: #{transformer_block.1} parent=1 // pred_fallthru
      _
    // Predicated region
    $region38: #{transformer_block.1} parent=1 // pred_check
      _
    $region39: #{transformer_block.1} parent=1 // pred_check_branch
      %35 = sbr.rel (0) target = $region41
    $region40: #{transformer_block.1} parent=1 // pred_region
      _
    $region41: #{transformer_block.1} parent=1 // pred_fallthru
      _
    %v36 = vld [vmem:[%s4] sm:$0x1]
    %v37 = vld [vmem:[%s5] sm:$0x1]
    %v38 = vld [vmem:[%s0] sm:$0xff]
    %v39 = vld [vmem:[%s0 + $0x8] sm:$0xff]
    %vm40 = vcmask 261120
    %v41 = vsel %vm40, %v38, 0.0
    %42 = vadd.xlane.f32.xlu0 %v41
    %v43 = vpop.xlane.xlu0 %42
    %v44 = vsel %vm40, %v39, 0.0
    %45 = vadd.xlane.f32.xlu0 %v44
    %v46 = vpop.xlane.xlu0 %45
    %v47 = vrcp.pop 32.0
    %v48 = vmul.f32 %v43, %v47
    %v49 = vmul.f32 %v46, %v47
    %v50 = vsub.f32 %v38, %v48
    %v51 = vsub.f32 %v39, %v49
    %v52 = vmul.f32 %v50, %v50
    %v53 = vmul.f32 %v51, %v51
    %v54 = vsel %vm40, %v52, 0.0
    %55 = vadd.xlane.f32.xlu0 %v54
    %v56 = vpop.xlane.xlu0 %55
    %v57 = vsel %vm40, %v53, 0.0
    %58 = vadd.xlane.f32.xlu0 %v57
    %v59 = vpop.xlane.xlu0 %58
    %v60 = vmul.f32 %v56, %v47
    %v61 = vmul.f32 %v59, %v47
    %v62 = vadd.f32 %v60, 1e-05
    %v63 = vadd.f32 %v61, 1e-05
    %v64 = vrsqrt.pop %v62
    %v65 = vrsqrt.pop %v63
    %v66 = vmul.f32 %v50, %v64
    %v67 = vmul.f32 %v51, %v65
    %v69 = vlaneseq
    %v70 = vshrl.u32 %v69, 7
    %v71 = vsub.s32 0, %v70
    %v72 = vrot.slane %v36, %v71
    %v74 = vmul.f32 %v66, %v72
    %v75 = vmul.f32 %v67, %v72
    %v77 = vlaneseq
    %v78 = vshrl.u32 %v77, 7
    %v79 = vsub.s32 0, %v78
    %v80 = vrot.slane %v37, %v79
    %v82 = vadd.f32 %v74, %v80
    %v83 = vadd.f32 %v75, %v80
    %v84 = vld [vmem:[%s1] sm:$0xff]
    %v85 = vld [vmem:[%s1 + $0x8] sm:$0xff]
    %v86 = vsel %vm40, %v84, 0.0
    %87 = vadd.xlane.f32.xlu0 %v86
    %v88 = vpop.xlane.xlu0 %87
    %v89 = vsel %vm40, %v85, 0.0
    %90 = vadd.xlane.f32.xlu0 %v89
    %v91 = vpop.xlane.xlu0 %90
    %v92 = vmul.f32 %v88, %v47
    %v93 = vmul.f32 %v91, %v47
    %v94 = vsub.f32 %v84, %v92
    %v95 = vsub.f32 %v85, %v93
    %v96 = vmul.f32 %v94, %v94
    %v97 = vmul.f32 %v95, %v95
    %v98 = vsel %vm40, %v96, 0.0
    %99 = vadd.xlane.f32.xlu0 %v98
    %v100 = vpop.xlane.xlu0 %99
    %v101 = vsel %vm40, %v97, 0.0
    %102 = vadd.xlane.f32.xlu0 %v101
    %v103 = vpop.xlane.xlu0 %102
    %v104 = vmul.f32 %v100, %v47
    %v105 = vmul.f32 %v103, %v47
    %v106 = vadd.f32 %v104, 1e-05
    %v107 = vadd.f32 %v105, 1e-05
    %v108 = vrsqrt.pop %v106
    %v109 = vrsqrt.pop %v107
    %v110 = vmul.f32 %v94, %v108
    %v111 = vmul.f32 %v95, %v109
    %v112 = vmul.f32 %v110, %v72
    %v113 = vmul.f32 %v111, %v72
    %v114 = vadd.f32 %v112, %v80
    %v115 = vadd.f32 %v113, %v80
    %v116 = vld [vmem:[%s2] sm:$0xff]
    %v117 = vld [vmem:[%s2 + $0x8] sm:$0xff]
    %v118 = vsel %vm40, %v116, 0.0
    %119 = vadd.xlane.f32.xlu0 %v118
    %v120 = vpop.xlane.xlu0 %119
    %v121 = vsel %vm40, %v117, 0.0
    %122 = vadd.xlane.f32.xlu0 %v121
    %v123 = vpop.xlane.xlu0 %122
    %v124 = vmul.f32 %v120, %v47
    %v125 = vmul.f32 %v123, %v47
    %v126 = vsub.f32 %v116, %v124
    %v127 = vsub.f32 %v117, %v125
    %v128 = vmul.f32 %v126, %v126
    %v129 = vmul.f32 %v127, %v127
    %v130 = vsel %vm40, %v128, 0.0
    %131 = vadd.xlane.f32.xlu0 %v130
    %v132 = vpop.xlane.xlu0 %131
    %v133 = vsel %vm40, %v129, 0.0
    %134 = vadd.xlane.f32.xlu0 %v133
    %v135 = vpop.xlane.xlu0 %134
    %v136 = vmul.f32 %v132, %v47
    %v137 = vmul.f32 %v135, %v47
    %v138 = vadd.f32 %v136, 1e-05
    %v139 = vadd.f32 %v137, 1e-05
    %v140 = vrsqrt.pop %v138
    %v141 = vrsqrt.pop %v139
    %v142 = vmul.f32 %v126, %v140
    %v143 = vmul.f32 %v127, %v141
    %v144 = vmul.f32 %v142, %v72
    %v145 = vmul.f32 %v143, %v72
    %v146 = vadd.f32 %v144, %v80
    %v147 = vadd.f32 %v145, %v80
    %v148 = vld [vmem:[%s6] sm:$0xff]
    %v149 = vld [vmem:[%s6 + $0x8] sm:$0xff]
    %v150 = vld [vmem:[%s6 + $0x10] sm:$0xff]
    %v151 = vld [vmem:[%s6 + $0x18] sm:$0xff]
    %v153 = vsel %vm40, %v82, 0
    %v156 = vsel %vm40, %v83, 0
    %v159 = vsel %vm40, %v114, 0
    %v162 = vsel %vm40, %v115, 0
    %v165 = vsel %vm40, %v146, 0
    %v168 = vsel %vm40, %v147, 0
    %170 = vmatprep.subr.mxu0 0.0
    %171 = vmatpush1.msra.mxu0 %v148
    %172 = vmatprep.subr.mxu0 0.0
    %173 = vmatpush1.msra.mxu0 %v149
    %174 = vmatprep.subr.mxu0 0.0
    %175 = vmatpush1.msra.mxu0 %v150
    %176 = vmatprep.subr.mxu0 0.0
    %177 = vmatpush1.msra.mxu0 %v151
    %178 = vmatprep.subr.mxu0 0.0
    %179 = vmatpush1.msra.mxu0 0.0
    %180 = vmatprep.subr.mxu0 0.0
    %181 = vmatpush1.msra.mxu0 0.0
    %182 = vmatprep.subr.mxu0 0.0
    %183 = vmatpush1.msra.mxu0 0.0
    %184 = vmatprep.subr.mxu0 0.0
    %185 = vmatpush1.msra.mxu0 0.0
    %186 = vmatprep.subr.mxu0 0.0
    %187 = vmatpush1.msra.mxu0 0.0
    %188 = vmatprep.subr.mxu0 0.0
    %189 = vmatpush1.msra.mxu0 0.0
    %190 = vmatprep.subr.mxu0 0.0
    %191 = vmatpush1.msra.mxu0 0.0
    %192 = vmatprep.subr.mxu0 0.0
    %193 = vmatpush1.msra.mxu0 0.0
    %194 = vmatprep.subr.mxu0 0.0
    %195 = vmatpush1.msra.mxu0 0.0
    %196 = vmatprep.subr.mxu0 0.0
    %197 = vmatpush1.msra.mxu0 0.0
    %198 = vmatprep.subr.mxu0 0.0
    %199 = vmatpush1.msra.mxu0 0.0
    %200 = vmatprep.subr.mxu0 0.0
    %201 = vmatpush1.msra.mxu0 0.0
    %202 = vmatprep.subr.mxu0 0.0
    %203 = vmatpush1.msra.mxu0 0.0
    %204 = vmatprep.subr.mxu0 0.0
    %205 = vmatpush1.msra.mxu0 0.0
    %206 = vmatprep.subr.mxu0 0.0
    %207 = vmatpush1.msra.mxu0 0.0
    %208 = vmatprep.subr.mxu0 0.0
    %209 = vmatpush1.msra.mxu0 0.0
    %210 = vmatprep.subr.mxu0 0.0
    %211 = vmatpush1.msra.mxu0 0.0
    %212 = vmatprep.subr.mxu0 0.0
    %213 = vmatpush1.msra.mxu0 0.0
    %214 = vmatprep.subr.mxu0 0.0
    %215 = vmatpush1.msra.mxu0 0.0
    %216 = vmatprep.subr.mxu0 0.0
    %217 = vmatpush1.msra.mxu0 0.0
    %218 = vmatprep.subr.mxu0 0.0
    %219 = vmatpush1.msra.mxu0 0.0
    %220 = vmatprep.subr.mxu0 0.0
    %221 = vmatpush1.msra.mxu0 0.0
    %222 = vmatprep.subr.mxu0 0.0
    %223 = vmatpush1.msra.mxu0 0.0
    %224 = vmatprep.subr.mxu0 0.0
    %225 = vmatpush1.msra.mxu0 0.0
    %226 = vmatprep.subr.mxu0 0.0
    %227 = vmatpush1.msra.mxu0 0.0
    %228 = vmatprep.subr.mxu0 0.0
    %229 = vmatpush1.msra.mxu0 0.0
    %230 = vmatprep.subr.mxu0 0.0
    %231 = vmatpush1.msra.mxu0 0.0
    %232 = vmatprep.subr.mxu0 0.0
    %233 = vmatpush1.msra.mxu0 0.0
    %234 = vmatprep.mubr.f32.mxu0 0.0
    %235 = vmatmul.mubr.f32.gmra.mrb[0].mxu0 %v153
    %v236 = vpop.f32.mrb[0].mxu0
    %v237 = vadd.f32 0.0, %v236
    %v238 = vpop.f32.mrb[0].mxu0
    %239 = vmatprep.mubr.f32.mxu0 0.0
    %240 = vmatmul.mubr.f32.gmra.mrb[0].mxu0 %v156
    %v241 = vpop.f32.mrb[0].mxu0
    %v242 = vadd.f32 0.0, %v241
    %v243 = vpop.f32.mrb[0].mxu0
    %244 = vmatprep.mubr.f32.mxu0 0.0
    %245 = vmatmul.mubr.f32.gmra.mrb[0].mxu0 %v159
    %v246 = vpop.f32.mrb[0].mxu0
    %v247 = vadd.f32 0.0, %v246
    %v248 = vpop.f32.mrb[0].mxu0
    %249 = vmatprep.mubr.f32.mxu0 0.0
    %250 = vmatmul.mubr.f32.gmra.mrb[0].mxu0 %v162
    %v251 = vpop.f32.mrb[0].mxu0
    %v252 = vadd.f32 0.0, %v251
    %v253 = vpop.f32.mrb[0].mxu0
    %254 = vmatprep.mubr.f32.mxu0 0.0
    %255 = vmatmul.mubr.f32.gmra.mrb[0].mxu0 %v165
    %v256 = vpop.f32.mrb[0].mxu0
    %v257 = vadd.f32 0.0, %v256
    %v258 = vpop.f32.mrb[0].mxu0
    %259 = vmatprep.mubr.f32.mxu0 0.0
    %260 = vmatmul.mubr.f32.gmra.mrb[0].mxu0 %v168
    %v261 = vpop.f32.mrb[0].mxu0
    %v262 = vadd.f32 0.0, %v261
    %v263 = vpop.f32.mrb[0].mxu0
    %264 = vdwg.mxu0
    %v265 = vld [vmem:[%s7] sm:$0x1]
    %v267 = vlaneseq
    %v268 = vshrl.u32 %v267, 7
    %v269 = vsub.s32 0, %v268
    %v270 = vrot.slane %v265, %v269
    %v272 = vadd.f32 %v237, %v270
    %v273 = vadd.f32 %v242, %v270
    %v274 = vadd.f32 %v247, %v270
    %v275 = vadd.f32 %v252, %v270
    %v276 = vadd.f32 %v257, %v270
    %v277 = vadd.f32 %v262, %v270
    %v278 = vld [vmem:[%s3] sm:$0xff]
    %v279 = vld [vmem:[%s3 + $0x8] sm:$0xff]
    %v280 = vld [vmem:[%s8] sm:$0xff]
    %v281 = vld [vmem:[%s8 + $0x8] sm:$0xff]
    %v282 = vld [vmem:[%s8 + $0x10] sm:$0xff]
    %v283 = vld [vmem:[%s8 + $0x18] sm:$0xff]
    %286 = vrot.lane.b32.xlu0 %v274, 96
    %v287 = vpop.permute.xlu0 %286
    %288 = vrot.lane.b32.xlu0 %v275, 96
    %v289 = vpop.permute.xlu0 %288
    %vm290 = vcmask 64512
    %v292 = vsel %vm290, %v272, 0
    %v295 = vsel %vm290, %v273, 0
    %v297 = vsel %vm290, %v287, 0
    %v299 = vsel %vm290, %v289, 0
    %301 = vmatprep.subr.mxu0 0.0
    %302 = vmatpush1.xpose.msra.mxu0 %v297
    %303 = vmatprep.subr.mxu0 0.0
    %304 = vmatpush1.xpose.msra.mxu0 %v299
    %305 = vmatprep.subr.mxu0 0.0
    %306 = vmatpush1.xpose.msra.mxu0 0.0
    %307 = vmatprep.subr.mxu0 0.0
    %308 = vmatpush1.xpose.msra.mxu0 0.0
    %309 = vmatprep.subr.mxu0 0.0
    %310 = vmatpush1.xpose.msra.mxu0 0.0
    %311 = vmatprep.subr.mxu0 0.0
    %312 = vmatpush1.xpose.msra.mxu0 0.0
    %313 = vmatprep.subr.mxu0 0.0
    %314 = vmatpush1.xpose.msra.mxu0 0.0
    %315 = vmatprep.subr.mxu0 0.0
    %316 = vmatpush1.xpose.msra.mxu0 0.0
    %317 = vmatprep.subr.mxu0 0.0
    %318 = vmatpush1.xpose.msra.mxu0 0.0
    %319 = vmatprep.subr.mxu0 0.0
    %320 = vmatpush1.xpose.msra.mxu0 0.0
    %321 = vmatprep.subr.mxu0 0.0
    %322 = vmatpush1.xpose.msra.mxu0 0.0
    %323 = vmatprep.subr.mxu0 0.0
    %324 = vmatpush1.xpose.msra.mxu0 0.0
    %325 = vmatprep.subr.mxu0 0.0
    %326 = vmatpush1.xpose.msra.mxu0 0.0
    %327 = vmatprep.subr.mxu0 0.0
    %328 = vmatpush1.xpose.msra.mxu0 0.0
    %329 = vmatprep.subr.mxu0 0.0
    %330 = vmatpush1.xpose.msra.mxu0 0.0
    %331 = vmatprep.subr.mxu0 0.0
    %332 = vmatpush1.xpose.msra.mxu0 0.0
    %333 = vmatprep.subr.mxu0 0.0
    %334 = vmatpush1.xpose.msra.mxu0 0.0
    %335 = vmatprep.subr.mxu0 0.0
    %336 = vmatpush1.xpose.msra.mxu0 0.0
    %337 = vmatprep.subr.mxu0 0.0
    %338 = vmatpush1.xpose.msra.mxu0 0.0
    %339 = vmatprep.subr.mxu0 0.0
    %340 = vmatpush1.xpose.msra.mxu0 0.0
    %341 = vmatprep.subr.mxu0 0.0
    %342 = vmatpush1.xpose.msra.mxu0 0.0
    %343 = vmatprep.subr.mxu0 0.0
    %344 = vmatpush1.xpose.msra.mxu0 0.0
    %345 = vmatprep.subr.mxu0 0.0
    %346 = vmatpush1.xpose.msra.mxu0 0.0
    %347 = vmatprep.subr.mxu0 0.0
    %348 = vmatpush1.xpose.msra.mxu0 0.0
    %349 = vmatprep.subr.mxu0 0.0
    %350 = vmatpush1.xpose.msra.mxu0 0.0
    %351 = vmatprep.subr.mxu0 0.0
    %352 = vmatpush1.xpose.msra.mxu0 0.0
    %353 = vmatprep.subr.mxu0 0.0
    %354 = vmatpush1.xpose.msra.mxu0 0.0
    %355 = vmatprep.subr.mxu0 0.0
    %356 = vmatpush1.xpose.msra.mxu0 0.0
    %357 = vmatprep.subr.mxu0 0.0
    %358 = vmatpush1.xpose.msra.mxu0 0.0
    %359 = vmatprep.subr.mxu0 0.0
    %360 = vmatpush1.xpose.msra.mxu0 0.0
    %361 = vmatprep.subr.mxu0 0.0
    %362 = vmatpush1.xpose.msra.mxu0 0.0
    %363 = vmatprep.subr.mxu0 0.0
    %364 = vmatpush1.xpose.msra.mxu0 0.0
    %365 = vmatprep.mubr.f32.mxu0 0.0
    %366 = vmatmul.mubr.f32.gmra.mrb[0].mxu0 %v292
    %v367 = vpop.f32.mrb[0].mxu0
    %v368 = vadd.f32 %v278, %v367
    %v369 = vpop.f32.mrb[0].mxu0
    %370 = vmatprep.mubr.f32.mxu0 0.0
    %371 = vmatmul.mubr.f32.gmra.mrb[0].mxu0 %v295
    %v372 = vpop.f32.mrb[0].mxu0
    %v373 = vadd.f32 %v279, %v372
    %v374 = vpop.f32.mrb[0].mxu0
    %375 = vdwg.mxu0
    %vm376 = vcmask 130048
    %v377 = vsel %vm376, %v368, -inf
    %378 = vmax.xlane.f32.xlu0 %v377
    %v379 = vpop.xlane.xlu0 %378
    %v380 = vsel %vm376, %v373, -inf
    %381 = vmax.xlane.f32.xlu0 %v380
    %v382 = vpop.xlane.xlu0 %381
    %v383 = vsub.f32 %v368, %v379
    %v384 = vsub.f32 %v373, %v382
    %v385 = vmul.f32 %v383, 1.442695
    %v386 = vpow.pop %v385
    %v387 = vmul.f32 %v384, 1.442695
    %v388 = vpow.pop %v387
    %v389 = vsel %vm376, %v386, 0.0
    %390 = vadd.xlane.f32.xlu0 %v389
    %v391 = vpop.xlane.xlu0 %390
    %v392 = vsel %vm376, %v388, 0.0
    %393 = vadd.xlane.f32.xlu0 %v392
    %v394 = vpop.xlane.xlu0 %393
    %v395 = vrcp.pop %v391
    %v396 = vrcp.pop %v394
    %v397 = vmul.f32 %v386, %v395
    %v398 = vmul.f32 %v388, %v396
    %401 = vrot.lane.b32.xlu0 %v276, 64
    %v402 = vpop.permute.xlu0 %401
    %403 = vrot.lane.b32.xlu0 %v277, 64
    %v404 = vpop.permute.xlu0 %403
    %v408 = vsel %vm376, %v397, 0
    %v411 = vsel %vm376, %v398, 0
    %413 = vmatprep.subr.mxu0 0.0
    %414 = vmatpush1.msra.mxu0 %v402
    %415 = vmatprep.subr.mxu0 0.0
    %416 = vmatpush1.msra.mxu0 %v404
    %417 = vmatprep.subr.mxu0 0.0
    %418 = vmatpush1.msra.mxu0 0.0
    %419 = vmatprep.subr.mxu0 0.0
    %420 = vmatpush1.msra.mxu0 0.0
    %421 = vmatprep.subr.mxu0 0.0
    %422 = vmatpush1.msra.mxu0 0.0
    %423 = vmatprep.subr.mxu0 0.0
    %424 = vmatpush1.msra.mxu0 0.0
    %425 = vmatprep.subr.mxu0 0.0
    %426 = vmatpush1.msra.mxu0 0.0
    %427 = vmatprep.subr.mxu0 0.0
    %428 = vmatpush1.msra.mxu0 0.0
    %429 = vmatprep.subr.mxu0 0.0
    %430 = vmatpush1.msra.mxu0 0.0
    %431 = vmatprep.subr.mxu0 0.0
    %432 = vmatpush1.msra.mxu0 0.0
    %433 = vmatprep.subr.mxu0 0.0
    %434 = vmatpush1.msra.mxu0 0.0
    %435 = vmatprep.subr.mxu0 0.0
    %436 = vmatpush1.msra.mxu0 0.0
    %437 = vmatprep.subr.mxu0 0.0
    %438 = vmatpush1.msra.mxu0 0.0
    %439 = vmatprep.subr.mxu0 0.0
    %440 = vmatpush1.msra.mxu0 0.0
    %441 = vmatprep.subr.mxu0 0.0
    %442 = vmatpush1.msra.mxu0 0.0
    %443 = vmatprep.subr.mxu0 0.0
    %444 = vmatpush1.msra.mxu0 0.0
    %445 = vmatprep.subr.mxu0 0.0
    %446 = vmatpush1.msra.mxu0 0.0
    %447 = vmatprep.subr.mxu0 0.0
    %448 = vmatpush1.msra.mxu0 0.0
    %449 = vmatprep.subr.mxu0 0.0
    %450 = vmatpush1.msra.mxu0 0.0
    %451 = vmatprep.subr.mxu0 0.0
    %452 = vmatpush1.msra.mxu0 0.0
    %453 = vmatprep.subr.mxu0 0.0
    %454 = vmatpush1.msra.mxu0 0.0
    %455 = vmatprep.subr.mxu0 0.0
    %456 = vmatpush1.msra.mxu0 0.0
    %457 = vmatprep.subr.mxu0 0.0
    %458 = vmatpush1.msra.mxu0 0.0
    %459 = vmatprep.subr.mxu0 0.0
    %460 = vmatpush1.msra.mxu0 0.0
    %461 = vmatprep.subr.mxu0 0.0
    %462 = vmatpush1.msra.mxu0 0.0
    %463 = vmatprep.subr.mxu0 0.0
    %464 = vmatpush1.msra.mxu0 0.0
    %465 = vmatprep.subr.mxu0 0.0
    %466 = vmatpush1.msra.mxu0 0.0
    %467 = vmatprep.subr.mxu0 0.0
    %468 = vmatpush1.msra.mxu0 0.0
    %469 = vmatprep.subr.mxu0 0.0
    %470 = vmatpush1.msra.mxu0 0.0
    %471 = vmatprep.subr.mxu0 0.0
    %472 = vmatpush1.msra.mxu0 0.0
    %473 = vmatprep.subr.mxu0 0.0
    %474 = vmatpush1.msra.mxu0 0.0
    %475 = vmatprep.subr.mxu0 0.0
    %476 = vmatpush1.msra.mxu0 0.0
    %477 = vmatprep.mubr.f32.mxu0 0.0
    %478 = vmatmul.mubr.f32.gmra.mrb[0].mxu0 %v408
    %v479 = vpop.f32.mrb[0].mxu0
    %v480 = vadd.f32 0.0, %v479
    %v481 = vpop.f32.mrb[0].mxu0
    %482 = vmatprep.mubr.f32.mxu0 0.0
    %483 = vmatmul.mubr.f32.gmra.mrb[0].mxu0 %v411
    %v484 = vpop.f32.mrb[0].mxu0
    %v485 = vadd.f32 0.0, %v484
    %v486 = vpop.f32.mrb[0].mxu0
    %487 = vdwg.mxu0
    %488 = vrot.lane.b32.xlu0 %v272, 120
    %v489 = vpop.permute.xlu0 %488
    %490 = vrot.lane.b32.xlu0 %v273, 120
    %v491 = vpop.permute.xlu0 %490
    %492 = vrot.lane.b32.xlu0 %v274, 88
    %v493 = vpop.permute.xlu0 %492
    %494 = vrot.lane.b32.xlu0 %v275, 88
    %v495 = vpop.permute.xlu0 %494
    %v496 = vsel %vm290, %v489, 0
    %v498 = vsel %vm290, %v491, 0
    %v500 = vsel %vm290, %v493, 0
    %v502 = vsel %vm290, %v495, 0
    %504 = vmatprep.subr.mxu0 0.0
    %505 = vmatpush1.xpose.msra.mxu0 %v500
    %506 = vmatprep.subr.mxu0 0.0
    %507 = vmatpush1.xpose.msra.mxu0 %v502
    %508 = vmatprep.subr.mxu0 0.0
    %509 = vmatpush1.xpose.msra.mxu0 0.0
    %510 = vmatprep.subr.mxu0 0.0
    %511 = vmatpush1.xpose.msra.mxu0 0.0
    %512 = vmatprep.subr.mxu0 0.0
    %513 = vmatpush1.xpose.msra.mxu0 0.0
    %514 = vmatprep.subr.mxu0 0.0
    %515 = vmatpush1.xpose.msra.mxu0 0.0
    %516 = vmatprep.subr.mxu0 0.0
    %517 = vmatpush1.xpose.msra.mxu0 0.0
    %518 = vmatprep.subr.mxu0 0.0
    %519 = vmatpush1.xpose.msra.mxu0 0.0
    %520 = vmatprep.subr.mxu0 0.0
    %521 = vmatpush1.xpose.msra.mxu0 0.0
    %522 = vmatprep.subr.mxu0 0.0
    %523 = vmatpush1.xpose.msra.mxu0 0.0
    %524 = vmatprep.subr.mxu0 0.0
    %525 = vmatpush1.xpose.msra.mxu0 0.0
    %526 = vmatprep.subr.mxu0 0.0
    %527 = vmatpush1.xpose.msra.mxu0 0.0
    %528 = vmatprep.subr.mxu0 0.0
    %529 = vmatpush1.xpose.msra.mxu0 0.0
    %530 = vmatprep.subr.mxu0 0.0
    %531 = vmatpush1.xpose.msra.mxu0 0.0
    %532 = vmatprep.subr.mxu0 0.0
    %533 = vmatpush1.xpose.msra.mxu0 0.0
    %534 = vmatprep.subr.mxu0 0.0
    %535 = vmatpush1.xpose.msra.mxu0 0.0
    %536 = vmatprep.subr.mxu0 0.0
    %537 = vmatpush1.xpose.msra.mxu0 0.0
    %538 = vmatprep.subr.mxu0 0.0
    %539 = vmatpush1.xpose.msra.mxu0 0.0
    %540 = vmatprep.subr.mxu0 0.0
    %541 = vmatpush1.xpose.msra.mxu0 0.0
    %542 = vmatprep.subr.mxu0 0.0
    %543 = vmatpush1.xpose.msra.mxu0 0.0
    %544 = vmatprep.subr.mxu0 0.0
    %545 = vmatpush1.xpose.msra.mxu0 0.0
    %546 = vmatprep.subr.mxu0 0.0
    %547 = vmatpush1.xpose.msra.mxu0 0.0
    %548 = vmatprep.subr.mxu0 0.0
    %549 = vmatpush1.xpose.msra.mxu0 0.0
    %550 = vmatprep.subr.mxu0 0.0
    %551 = vmatpush1.xpose.msra.mxu0 0.0
    %552 = vmatprep.subr.mxu0 0.0
    %553 = vmatpush1.xpose.msra.mxu0 0.0
    %554 = vmatprep.subr.mxu0 0.0
    %555 = vmatpush1.xpose.msra.mxu0 0.0
    %556 = vmatprep.subr.mxu0 0.0
    %557 = vmatpush1.xpose.msra.mxu0 0.0
    %558 = vmatprep.subr.mxu0 0.0
    %559 = vmatpush1.xpose.msra.mxu0 0.0
    %560 = vmatprep.subr.mxu0 0.0
    %561 = vmatpush1.xpose.msra.mxu0 0.0
    %562 = vmatprep.subr.mxu0 0.0
    %563 = vmatpush1.xpose.msra.mxu0 0.0
    %564 = vmatprep.subr.mxu0 0.0
    %565 = vmatpush1.xpose.msra.mxu0 0.0
    %566 = vmatprep.subr.mxu0 0.0
    %567 = vmatpush1.xpose.msra.mxu0 0.0
    %568 = vmatprep.mubr.f32.mxu0 0.0
    %569 = vmatmul.mubr.f32.gmra.mrb[0].mxu0 %v496
    %v570 = vpop.f32.mrb[0].mxu0
    %v571 = vadd.f32 %v278, %v570
    %v572 = vpop.f32.mrb[0].mxu0
    %573 = vmatprep.mubr.f32.mxu0 0.0
    %574 = vmatmul.mubr.f32.gmra.mrb[0].mxu0 %v498
    %v575 = vpop.f32.mrb[0].mxu0
    %v576 = vadd.f32 %v279, %v575
    %v577 = vpop.f32.mrb[0].mxu0
    %578 = vdwg.mxu0
    %v579 = vsel %vm376, %v571, -inf
    %580 = vmax.xlane.f32.xlu0 %v579
    %v581 = vpop.xlane.xlu0 %580
    %v582 = vsel %vm376, %v576, -inf
    %583 = vmax.xlane.f32.xlu0 %v582
    %v584 = vpop.xlane.xlu0 %583
    %v585 = vsub.f32 %v571, %v581
    %v586 = vsub.f32 %v576, %v584
    %v587 = vmul.f32 %v585, 1.442695
    %v588 = vpow.pop %v587
    %v589 = vmul.f32 %v586, 1.442695
    %v590 = vpow.pop %v589
    %v591 = vsel %vm376, %v588, 0.0
    %592 = vadd.xlane.f32.xlu0 %v591
    %v593 = vpop.xlane.xlu0 %592
    %v594 = vsel %vm376, %v590, 0.0
    %595 = vadd.xlane.f32.xlu0 %v594
    %v596 = vpop.xlane.xlu0 %595
    %v597 = vrcp.pop %v593
    %v598 = vrcp.pop %v596
    %v599 = vmul.f32 %v588, %v597
    %v600 = vmul.f32 %v590, %v598
    %601 = vrot.lane.b32.xlu0 %v276, 56
    %v602 = vpop.permute.xlu0 %601
    %603 = vrot.lane.b32.xlu0 %v277, 56
    %v604 = vpop.permute.xlu0 %603
    %v608 = vsel %vm376, %v599, 0
    %v611 = vsel %vm376, %v600, 0
    %613 = vmatprep.subr.mxu0 0.0
    %614 = vmatpush1.msra.mxu0 %v602
    %615 = vmatprep.subr.mxu0 0.0
    %616 = vmatpush1.msra.mxu0 %v604
    %617 = vmatprep.subr.mxu0 0.0
    %618 = vmatpush1.msra.mxu0 0.0
    %619 = vmatprep.subr.mxu0 0.0
    %620 = vmatpush1.msra.mxu0 0.0
    %621 = vmatprep.subr.mxu0 0.0
    %622 = vmatpush1.msra.mxu0 0.0
    %623 = vmatprep.subr.mxu0 0.0
    %624 = vmatpush1.msra.mxu0 0.0
    %625 = vmatprep.subr.mxu0 0.0
    %626 = vmatpush1.msra.mxu0 0.0
    %627 = vmatprep.subr.mxu0 0.0
    %628 = vmatpush1.msra.mxu0 0.0
    %629 = vmatprep.subr.mxu0 0.0
    %630 = vmatpush1.msra.mxu0 0.0
    %631 = vmatprep.subr.mxu0 0.0
    %632 = vmatpush1.msra.mxu0 0.0
    %633 = vmatprep.subr.mxu0 0.0
    %634 = vmatpush1.msra.mxu0 0.0
    %635 = vmatprep.subr.mxu0 0.0
    %636 = vmatpush1.msra.mxu0 0.0
    %637 = vmatprep.subr.mxu0 0.0
    %638 = vmatpush1.msra.mxu0 0.0
    %639 = vmatprep.subr.mxu0 0.0
    %640 = vmatpush1.msra.mxu0 0.0
    %641 = vmatprep.subr.mxu0 0.0
    %642 = vmatpush1.msra.mxu0 0.0
    %643 = vmatprep.subr.mxu0 0.0
    %644 = vmatpush1.msra.mxu0 0.0
    %645 = vmatprep.subr.mxu0 0.0
    %646 = vmatpush1.msra.mxu0 0.0
    %647 = vmatprep.subr.mxu0 0.0
    %648 = vmatpush1.msra.mxu0 0.0
    %649 = vmatprep.subr.mxu0 0.0
    %650 = vmatpush1.msra.mxu0 0.0
    %651 = vmatprep.subr.mxu0 0.0
    %652 = vmatpush1.msra.mxu0 0.0
    %653 = vmatprep.subr.mxu0 0.0
    %654 = vmatpush1.msra.mxu0 0.0
    %655 = vmatprep.subr.mxu0 0.0
    %656 = vmatpush1.msra.mxu0 0.0
    %657 = vmatprep.subr.mxu0 0.0
    %658 = vmatpush1.msra.mxu0 0.0
    %659 = vmatprep.subr.mxu0 0.0
    %660 = vmatpush1.msra.mxu0 0.0
    %661 = vmatprep.subr.mxu0 0.0
    %662 = vmatpush1.msra.mxu0 0.0
    %663 = vmatprep.subr.mxu0 0.0
    %664 = vmatpush1.msra.mxu0 0.0
    %665 = vmatprep.subr.mxu0 0.0
    %666 = vmatpush1.msra.mxu0 0.0
    %667 = vmatprep.subr.mxu0 0.0
    %668 = vmatpush1.msra.mxu0 0.0
    %669 = vmatprep.subr.mxu0 0.0
    %670 = vmatpush1.msra.mxu0 0.0
    %671 = vmatprep.subr.mxu0 0.0
    %672 = vmatpush1.msra.mxu0 0.0
    %673 = vmatprep.subr.mxu0 0.0
    %674 = vmatpush1.msra.mxu0 0.0
    %675 = vmatprep.subr.mxu0 0.0
    %676 = vmatpush1.msra.mxu0 0.0
    %677 = vmatprep.mubr.f32.mxu0 0.0
    %678 = vmatmul.mubr.f32.gmra.mrb[0].mxu0 %v608
    %v679 = vpop.f32.mrb[0].mxu0
    %v680 = vadd.f32 0.0, %v679
    %v681 = vpop.f32.mrb[0].mxu0
    %682 = vmatprep.mubr.f32.mxu0 0.0
    %683 = vmatmul.mubr.f32.gmra.mrb[0].mxu0 %v611
    %v684 = vpop.f32.mrb[0].mxu0
    %v685 = vadd.f32 0.0, %v684
    %v686 = vpop.f32.mrb[0].mxu0
    %687 = vdwg.mxu0
    %v689 = vsel %vm290, %v680, 0
    %v692 = vsel %vm290, %v685, 0
    %694 = vmatprep.subr.mxu0 0.0
    %695 = vmatpush1.msra.mxu0 %v281
    %696 = vmatprep.subr.mxu0 0.0
    %697 = vmatpush1.msra.mxu0 0.0
    %698 = vmatprep.subr.mxu0 0.0
    %699 = vmatpush1.msra.mxu0 0.0
    %700 = vmatprep.subr.mxu0 0.0
    %701 = vmatpush1.msra.mxu0 0.0
    %702 = vmatprep.subr.mxu0 0.0
    %703 = vmatpush1.msra.mxu0 0.0
    %704 = vmatprep.subr.mxu0 0.0
    %705 = vmatpush1.msra.mxu0 0.0
    %706 = vmatprep.subr.mxu0 0.0
    %707 = vmatpush1.msra.mxu0 0.0
    %708 = vmatprep.subr.mxu0 0.0
    %709 = vmatpush1.msra.mxu0 0.0
    %710 = vmatprep.subr.mxu0 0.0
    %711 = vmatpush1.msra.mxu0 0.0
    %712 = vmatprep.subr.mxu0 0.0
    %713 = vmatpush1.msra.mxu0 0.0
    %714 = vmatprep.subr.mxu0 0.0
    %715 = vmatpush1.msra.mxu0 0.0
    %716 = vmatprep.subr.mxu0 0.0
    %717 = vmatpush1.msra.mxu0 0.0
    %718 = vmatprep.subr.mxu0 0.0
    %719 = vmatpush1.msra.mxu0 0.0
    %720 = vmatprep.subr.mxu0 0.0
    %721 = vmatpush1.msra.mxu0 0.0
    %722 = vmatprep.subr.mxu0 0.0
    %723 = vmatpush1.msra.mxu0 0.0
    %724 = vmatprep.subr.mxu0 0.0
    %725 = vmatpush1.msra.mxu0 0.0
    %726 = vmatprep.subr.mxu0 0.0
    %727 = vmatpush1.msra.mxu0 0.0
    %728 = vmatprep.subr.mxu0 0.0
    %729 = vmatpush1.msra.mxu0 0.0
    %730 = vmatprep.subr.mxu0 0.0
    %731 = vmatpush1.msra.mxu0 0.0
    %732 = vmatprep.subr.mxu0 0.0
    %733 = vmatpush1.msra.mxu0 0.0
    %734 = vmatprep.subr.mxu0 0.0
    %735 = vmatpush1.msra.mxu0 0.0
    %736 = vmatprep.subr.mxu0 0.0
    %737 = vmatpush1.msra.mxu0 0.0
    %738 = vmatprep.subr.mxu0 0.0
    %739 = vmatpush1.msra.mxu0 0.0
    %740 = vmatprep.subr.mxu0 0.0
    %741 = vmatpush1.msra.mxu0 0.0
    %742 = vmatprep.subr.mxu0 0.0
    %743 = vmatpush1.msra.mxu0 0.0
    %744 = vmatprep.subr.mxu0 0.0
    %745 = vmatpush1.msra.mxu0 0.0
    %746 = vmatprep.subr.mxu0 0.0
    %747 = vmatpush1.msra.mxu0 0.0
    %748 = vmatprep.subr.mxu0 0.0
    %749 = vmatpush1.msra.mxu0 0.0
    %750 = vmatprep.subr.mxu0 0.0
    %751 = vmatpush1.msra.mxu0 0.0
    %752 = vmatprep.subr.mxu0 0.0
    %753 = vmatpush1.msra.mxu0 0.0
    %754 = vmatprep.subr.mxu0 0.0
    %755 = vmatpush1.msra.mxu0 0.0
    %756 = vmatprep.subr.mxu0 0.0
    %757 = vmatpush1.msra.mxu0 0.0
    %758 = vmatprep.mubr.f32.mxu0 0.0
    %759 = vmatmul.mubr.f32.gmra.mrb[0].mxu0 %v689
    %v760 = vpop.f32.mrb[0].mxu0
    %v761 = vadd.f32 0.0, %v760
    %v762 = vpop.f32.mrb[0].mxu0
    %763 = vmatprep.mubr.f32.mxu0 0.0
    %764 = vmatmul.mubr.f32.gmra.mrb[0].mxu0 %v692
    %v765 = vpop.f32.mrb[0].mxu0
    %v766 = vadd.f32 0.0, %v765
    %v767 = vpop.f32.mrb[0].mxu0
    %768 = vdwg.mxu0
    %v770 = vsel %vm290, %v480, 0
    %v773 = vsel %vm290, %v485, 0
    %775 = vmatprep.subr.mxu0 0.0
    %776 = vmatpush1.msra.mxu0 %v280
    %777 = vmatprep.subr.mxu0 0.0
    %778 = vmatpush1.msra.mxu0 0.0
    %779 = vmatprep.subr.mxu0 0.0
    %780 = vmatpush1.msra.mxu0 0.0
    %781 = vmatprep.subr.mxu0 0.0
    %782 = vmatpush1.msra.mxu0 0.0
    %783 = vmatprep.subr.mxu0 0.0
    %784 = vmatpush1.msra.mxu0 0.0
    %785 = vmatprep.subr.mxu0 0.0
    %786 = vmatpush1.msra.mxu0 0.0
    %787 = vmatprep.subr.mxu0 0.0
    %788 = vmatpush1.msra.mxu0 0.0
    %789 = vmatprep.subr.mxu0 0.0
    %790 = vmatpush1.msra.mxu0 0.0
    %791 = vmatprep.subr.mxu0 0.0
    %792 = vmatpush1.msra.mxu0 0.0
    %793 = vmatprep.subr.mxu0 0.0
    %794 = vmatpush1.msra.mxu0 0.0
    %795 = vmatprep.subr.mxu0 0.0
    %796 = vmatpush1.msra.mxu0 0.0
    %797 = vmatprep.subr.mxu0 0.0
    %798 = vmatpush1.msra.mxu0 0.0
    %799 = vmatprep.subr.mxu0 0.0
    %800 = vmatpush1.msra.mxu0 0.0
    %801 = vmatprep.subr.mxu0 0.0
    %802 = vmatpush1.msra.mxu0 0.0
    %803 = vmatprep.subr.mxu0 0.0
    %804 = vmatpush1.msra.mxu0 0.0
    %805 = vmatprep.subr.mxu0 0.0
    %806 = vmatpush1.msra.mxu0 0.0
    %807 = vmatprep.subr.mxu0 0.0
    %808 = vmatpush1.msra.mxu0 0.0
    %809 = vmatprep.subr.mxu0 0.0
    %810 = vmatpush1.msra.mxu0 0.0
    %811 = vmatprep.subr.mxu0 0.0
    %812 = vmatpush1.msra.mxu0 0.0
    %813 = vmatprep.subr.mxu0 0.0
    %814 = vmatpush1.msra.mxu0 0.0
    %815 = vmatprep.subr.mxu0 0.0
    %816 = vmatpush1.msra.mxu0 0.0
    %817 = vmatprep.subr.mxu0 0.0
    %818 = vmatpush1.msra.mxu0 0.0
    %819 = vmatprep.subr.mxu0 0.0
    %820 = vmatpush1.msra.mxu0 0.0
    %821 = vmatprep.subr.mxu0 0.0
    %822 = vmatpush1.msra.mxu0 0.0
    %823 = vmatprep.subr.mxu0 0.0
    %824 = vmatpush1.msra.mxu0 0.0
    %825 = vmatprep.subr.mxu0 0.0
    %826 = vmatpush1.msra.mxu0 0.0
    %827 = vmatprep.subr.mxu0 0.0
    %828 = vmatpush1.msra.mxu0 0.0
    %829 = vmatprep.subr.mxu0 0.0
    %830 = vmatpush1.msra.mxu0 0.0
    %831 = vmatprep.subr.mxu0 0.0
    %832 = vmatpush1.msra.mxu0 0.0
    %833 = vmatprep.subr.mxu0 0.0
    %834 = vmatpush1.msra.mxu0 0.0
    %835 = vmatprep.subr.mxu0 0.0
    %836 = vmatpush1.msra.mxu0 0.0
    %837 = vmatprep.subr.mxu0 0.0
    %838 = vmatpush1.msra.mxu0 0.0
    %839 = vmatprep.mubr.f32.mxu0 0.0
    %840 = vmatmul.mubr.f32.gmra.mrb[0].mxu0 %v770
    %v841 = vpop.f32.mrb[0].mxu0
    %v842 = vadd.f32 %v761, %v841
    %v843 = vpop.f32.mrb[0].mxu0
    %844 = vmatprep.mubr.f32.mxu0 0.0
    %845 = vmatmul.mubr.f32.gmra.mrb[0].mxu0 %v773
    %v846 = vpop.f32.mrb[0].mxu0
    %v847 = vadd.f32 %v766, %v846
    %v848 = vpop.f32.mrb[0].mxu0
    %849 = vdwg.mxu0
    %850 = vrot.lane.b32.xlu0 %v272, 112
    %v851 = vpop.permute.xlu0 %850
    %852 = vrot.lane.b32.xlu0 %v273, 112
    %v853 = vpop.permute.xlu0 %852
    %854 = vrot.lane.b32.xlu0 %v274, 80
    %v855 = vpop.permute.xlu0 %854
    %856 = vrot.lane.b32.xlu0 %v275, 80
    %v857 = vpop.permute.xlu0 %856
    %v858 = vsel %vm290, %v851, 0
    %v860 = vsel %vm290, %v853, 0
    %v862 = vsel %vm290, %v855, 0
    %v864 = vsel %vm290, %v857, 0
    %866 = vmatprep.subr.mxu0 0.0
    %867 = vmatpush1.xpose.msra.mxu0 %v862
    %868 = vmatprep.subr.mxu0 0.0
    %869 = vmatpush1.xpose.msra.mxu0 %v864
    %870 = vmatprep.subr.mxu0 0.0
    %871 = vmatpush1.xpose.msra.mxu0 0.0
    %872 = vmatprep.subr.mxu0 0.0
    %873 = vmatpush1.xpose.msra.mxu0 0.0
    %874 = vmatprep.subr.mxu0 0.0
    %875 = vmatpush1.xpose.msra.mxu0 0.0
    %876 = vmatprep.subr.mxu0 0.0
    %877 = vmatpush1.xpose.msra.mxu0 0.0
    %878 = vmatprep.subr.mxu0 0.0
    %879 = vmatpush1.xpose.msra.mxu0 0.0
    %880 = vmatprep.subr.mxu0 0.0
    %881 = vmatpush1.xpose.msra.mxu0 0.0
    %882 = vmatprep.subr.mxu0 0.0
    %883 = vmatpush1.xpose.msra.mxu0 0.0
    %884 = vmatprep.subr.mxu0 0.0
    %885 = vmatpush1.xpose.msra.mxu0 0.0
    %886 = vmatprep.subr.mxu0 0.0
    %887 = vmatpush1.xpose.msra.mxu0 0.0
    %888 = vmatprep.subr.mxu0 0.0
    %889 = vmatpush1.xpose.msra.mxu0 0.0
    %890 = vmatprep.subr.mxu0 0.0
    %891 = vmatpush1.xpose.msra.mxu0 0.0
    %892 = vmatprep.subr.mxu0 0.0
    %893 = vmatpush1.xpose.msra.mxu0 0.0
    %894 = vmatprep.subr.mxu0 0.0
    %895 = vmatpush1.xpose.msra.mxu0 0.0
    %896 = vmatprep.subr.mxu0 0.0
    %897 = vmatpush1.xpose.msra.mxu0 0.0
    %898 = vmatprep.subr.mxu0 0.0
    %899 = vmatpush1.xpose.msra.mxu0 0.0
    %900 = vmatprep.subr.mxu0 0.0
    %901 = vmatpush1.xpose.msra.mxu0 0.0
    %902 = vmatprep.subr.mxu0 0.0
    %903 = vmatpush1.xpose.msra.mxu0 0.0
    %904 = vmatprep.subr.mxu0 0.0
    %905 = vmatpush1.xpose.msra.mxu0 0.0
    %906 = vmatprep.subr.mxu0 0.0
    %907 = vmatpush1.xpose.msra.mxu0 0.0
    %908 = vmatprep.subr.mxu0 0.0
    %909 = vmatpush1.xpose.msra.mxu0 0.0
    %910 = vmatprep.subr.mxu0 0.0
    %911 = vmatpush1.xpose.msra.mxu0 0.0
    %912 = vmatprep.subr.mxu0 0.0
    %913 = vmatpush1.xpose.msra.mxu0 0.0
    %914 = vmatprep.subr.mxu0 0.0
    %915 = vmatpush1.xpose.msra.mxu0 0.0
    %916 = vmatprep.subr.mxu0 0.0
    %917 = vmatpush1.xpose.msra.mxu0 0.0
    %918 = vmatprep.subr.mxu0 0.0
    %919 = vmatpush1.xpose.msra.mxu0 0.0
    %920 = vmatprep.subr.mxu0 0.0
    %921 = vmatpush1.xpose.msra.mxu0 0.0
    %922 = vmatprep.subr.mxu0 0.0
    %923 = vmatpush1.xpose.msra.mxu0 0.0
    %924 = vmatprep.subr.mxu0 0.0
    %925 = vmatpush1.xpose.msra.mxu0 0.0
    %926 = vmatprep.subr.mxu0 0.0
    %927 = vmatpush1.xpose.msra.mxu0 0.0
    %928 = vmatprep.subr.mxu0 0.0
    %929 = vmatpush1.xpose.msra.mxu0 0.0
    %930 = vmatprep.mubr.f32.mxu0 0.0
    %931 = vmatmul.mubr.f32.gmra.mrb[0].mxu0 %v858
    %v932 = vpop.f32.mrb[0].mxu0
    %v933 = vadd.f32 %v278, %v932
    %v934 = vpop.f32.mrb[0].mxu0
    %935 = vmatprep.mubr.f32.mxu0 0.0
    %936 = vmatmul.mubr.f32.gmra.mrb[0].mxu0 %v860
    %v937 = vpop.f32.mrb[0].mxu0
    %v938 = vadd.f32 %v279, %v937
    %v939 = vpop.f32.mrb[0].mxu0
    %940 = vdwg.mxu0
    %v941 = vsel %vm376, %v933, -inf
    %942 = vmax.xlane.f32.xlu0 %v941
    %v943 = vpop.xlane.xlu0 %942
    %v944 = vsel %vm376, %v938, -inf
    %945 = vmax.xlane.f32.xlu0 %v944
    %v946 = vpop.xlane.xlu0 %945
    %v947 = vsub.f32 %v933, %v943
    %v948 = vsub.f32 %v938, %v946
    %v949 = vmul.f32 %v947, 1.442695
    %v950 = vpow.pop %v949
    %v951 = vmul.f32 %v948, 1.442695
    %v952 = vpow.pop %v951
    %v953 = vsel %vm376, %v950, 0.0
    %954 = vadd.xlane.f32.xlu0 %v953
    %v955 = vpop.xlane.xlu0 %954
    %v956 = vsel %vm376, %v952, 0.0
    %957 = vadd.xlane.f32.xlu0 %v956
    %v958 = vpop.xlane.xlu0 %957
    %v959 = vrcp.pop %v955
    %v960 = vrcp.pop %v958
    %v961 = vmul.f32 %v950, %v959
    %v962 = vmul.f32 %v952, %v960
    %963 = vrot.lane.b32.xlu0 %v276, 48
    %v964 = vpop.permute.xlu0 %963
    %965 = vrot.lane.b32.xlu0 %v277, 48
    %v966 = vpop.permute.xlu0 %965
    %v970 = vsel %vm376, %v961, 0
    %v973 = vsel %vm376, %v962, 0
    %975 = vmatprep.subr.mxu0 0.0
    %976 = vmatpush1.msra.mxu0 %v964
    %977 = vmatprep.subr.mxu0 0.0
    %978 = vmatpush1.msra.mxu0 %v966
    %979 = vmatprep.subr.mxu0 0.0
    %980 = vmatpush1.msra.mxu0 0.0
    %981 = vmatprep.subr.mxu0 0.0
    %982 = vmatpush1.msra.mxu0 0.0
    %983 = vmatprep.subr.mxu0 0.0
    %984 = vmatpush1.msra.mxu0 0.0
    %985 = vmatprep.subr.mxu0 0.0
    %986 = vmatpush1.msra.mxu0 0.0
    %987 = vmatprep.subr.mxu0 0.0
    %988 = vmatpush1.msra.mxu0 0.0
    %989 = vmatprep.subr.mxu0 0.0
    %990 = vmatpush1.msra.mxu0 0.0
    %991 = vmatprep.subr.mxu0 0.0
    %992 = vmatpush1.msra.mxu0 0.0
    %993 = vmatprep.subr.mxu0 0.0
    %994 = vmatpush1.msra.mxu0 0.0
    %995 = vmatprep.subr.mxu0 0.0
    %996 = vmatpush1.msra.mxu0 0.0
    %997 = vmatprep.subr.mxu0 0.0
    %998 = vmatpush1.msra.mxu0 0.0
    %999 = vmatprep.subr.mxu0 0.0
    %1000 = vmatpush1.msra.mxu0 0.0
    %1001 = vmatprep.subr.mxu0 0.0
    %1002 = vmatpush1.msra.mxu0 0.0
    %1003 = vmatprep.subr.mxu0 0.0
    %1004 = vmatpush1.msra.mxu0 0.0
    %1005 = vmatprep.subr.mxu0 0.0
    %1006 = vmatpush1.msra.mxu0 0.0
    %1007 = vmatprep.subr.mxu0 0.0
    %1008 = vmatpush1.msra.mxu0 0.0
    %1009 = vmatprep.subr.mxu0 0.0
    %1010 = vmatpush1.msra.mxu0 0.0
    %1011 = vmatprep.subr.mxu0 0.0
    %1012 = vmatpush1.msra.mxu0 0.0
    %1013 = vmatprep.subr.mxu0 0.0
    %1014 = vmatpush1.msra.mxu0 0.0
    %1015 = vmatprep.subr.mxu0 0.0
    %1016 = vmatpush1.msra.mxu0 0.0
    %1017 = vmatprep.subr.mxu0 0.0
    %1018 = vmatpush1.msra.mxu0 0.0
    %1019 = vmatprep.subr.mxu0 0.0
    %1020 = vmatpush1.msra.mxu0 0.0
    %1021 = vmatprep.subr.mxu0 0.0
    %1022 = vmatpush1.msra.mxu0 0.0
    %1023 = vmatprep.subr.mxu0 0.0
    %1024 = vmatpush1.msra.mxu0 0.0
    %1025 = vmatprep.subr.mxu0 0.0
    %1026 = vmatpush1.msra.mxu0 0.0
    %1027 = vmatprep.subr.mxu0 0.0
    %1028 = vmatpush1.msra.mxu0 0.0
    %1029 = vmatprep.subr.mxu0 0.0
    %1030 = vmatpush1.msra.mxu0 0.0
    %1031 = vmatprep.subr.mxu0 0.0
    %1032 = vmatpush1.msra.mxu0 0.0
    %1033 = vmatprep.subr.mxu0 0.0
    %1034 = vmatpush1.msra.mxu0 0.0
    %1035 = vmatprep.subr.mxu0 0.0
    %1036 = vmatpush1.msra.mxu0 0.0
    %1037 = vmatprep.subr.mxu0 0.0
    %1038 = vmatpush1.msra.mxu0 0.0
    %1039 = vmatprep.mubr.f32.mxu0 0.0
    %1040 = vmatmul.mubr.f32.gmra.mrb[0].mxu0 %v970
    %v1041 = vpop.f32.mrb[0].mxu0
    %v1042 = vadd.f32 0.0, %v1041
    %v1043 = vpop.f32.mrb[0].mxu0
    %1044 = vmatprep.mubr.f32.mxu0 0.0
    %1045 = vmatmul.mubr.f32.gmra.mrb[0].mxu0 %v973
    %v1046 = vpop.f32.mrb[0].mxu0
    %v1047 = vadd.f32 0.0, %v1046
    %v1048 = vpop.f32.mrb[0].mxu0
    %1049 = vdwg.mxu0
    %v1051 = vsel %vm290, %v1042, 0
    %v1054 = vsel %vm290, %v1047, 0
    %1056 = vmatprep.subr.mxu0 0.0
    %1057 = vmatpush1.msra.mxu0 %v282
    %1058 = vmatprep.subr.mxu0 0.0
    %1059 = vmatpush1.msra.mxu0 0.0
    %1060 = vmatprep.subr.mxu0 0.0
    %1061 = vmatpush1.msra.mxu0 0.0
    %1062 = vmatprep.subr.mxu0 0.0
    %1063 = vmatpush1.msra.mxu0 0.0
    %1064 = vmatprep.subr.mxu0 0.0
    %1065 = vmatpush1.msra.mxu0 0.0
    %1066 = vmatprep.subr.mxu0 0.0
    %1067 = vmatpush1.msra.mxu0 0.0
    %1068 = vmatprep.subr.mxu0 0.0
    %1069 = vmatpush1.msra.mxu0 0.0
    %1070 = vmatprep.subr.mxu0 0.0
    %1071 = vmatpush1.msra.mxu0 0.0
    %1072 = vmatprep.subr.mxu0 0.0
    %1073 = vmatpush1.msra.mxu0 0.0
    %1074 = vmatprep.subr.mxu0 0.0
    %1075 = vmatpush1.msra.mxu0 0.0
    %1076 = vmatprep.subr.mxu0 0.0
    %1077 = vmatpush1.msra.mxu0 0.0
    %1078 = vmatprep.subr.mxu0 0.0
    %1079 = vmatpush1.msra.mxu0 0.0
    %1080 = vmatprep.subr.mxu0 0.0
    %1081 = vmatpush1.msra.mxu0 0.0
    %1082 = vmatprep.subr.mxu0 0.0
    %1083 = vmatpush1.msra.mxu0 0.0
    %1084 = vmatprep.subr.mxu0 0.0
    %1085 = vmatpush1.msra.mxu0 0.0
    %1086 = vmatprep.subr.mxu0 0.0
    %1087 = vmatpush1.msra.mxu0 0.0
    %1088 = vmatprep.subr.mxu0 0.0
    %1089 = vmatpush1.msra.mxu0 0.0
    %1090 = vmatprep.subr.mxu0 0.0
    %1091 = vmatpush1.msra.mxu0 0.0
    %1092 = vmatprep.subr.mxu0 0.0
    %1093 = vmatpush1.msra.mxu0 0.0
    %1094 = vmatprep.subr.mxu0 0.0
    %1095 = vmatpush1.msra.mxu0 0.0
    %1096 = vmatprep.subr.mxu0 0.0
    %1097 = vmatpush1.msra.mxu0 0.0
    %1098 = vmatprep.subr.mxu0 0.0
    %1099 = vmatpush1.msra.mxu0 0.0
    %1100 = vmatprep.subr.mxu0 0.0
    %1101 = vmatpush1.msra.mxu0 0.0
    %1102 = vmatprep.subr.mxu0 0.0
    %1103 = vmatpush1.msra.mxu0 0.0
    %1104 = vmatprep.subr.mxu0 0.0
    %1105 = vmatpush1.msra.mxu0 0.0
    %1106 = vmatprep.subr.mxu0 0.0
    %1107 = vmatpush1.msra.mxu0 0.0
    %1108 = vmatprep.subr.mxu0 0.0
    %1109 = vmatpush1.msra.mxu0 0.0
    %1110 = vmatprep.subr.mxu0 0.0
    %1111 = vmatpush1.msra.mxu0 0.0
    %1112 = vmatprep.subr.mxu0 0.0
    %1113 = vmatpush1.msra.mxu0 0.0
    %1114 = vmatprep.subr.mxu0 0.0
    %1115 = vmatpush1.msra.mxu0 0.0
    %1116 = vmatprep.subr.mxu0 0.0
    %1117 = vmatpush1.msra.mxu0 0.0
    %1118 = vmatprep.subr.mxu0 0.0
    %1119 = vmatpush1.msra.mxu0 0.0
    %1120 = vmatprep.mubr.f32.mxu0 0.0
    %1121 = vmatmul.mubr.f32.gmra.mrb[0].mxu0 %v1051
    %v1122 = vpop.f32.mrb[0].mxu0
    %v1123 = vadd.f32 0.0, %v1122
    %v1124 = vpop.f32.mrb[0].mxu0
    %1125 = vmatprep.mubr.f32.mxu0 0.0
    %1126 = vmatmul.mubr.f32.gmra.mrb[0].mxu0 %v1054
    %v1127 = vpop.f32.mrb[0].mxu0
    %v1128 = vadd.f32 0.0, %v1127
    %v1129 = vpop.f32.mrb[0].mxu0
    %1130 = vdwg.mxu0
    %v1131 = vadd.f32 %v842, %v1123
    %v1132 = vadd.f32 %v847, %v1128
    %1133 = vrot.lane.b32.xlu0 %v272, 104
    %v1134 = vpop.permute.xlu0 %1133
    %1135 = vrot.lane.b32.xlu0 %v273, 104
    %v1136 = vpop.permute.xlu0 %1135
    %1137 = vrot.lane.b32.xlu0 %v274, 72
    %v1138 = vpop.permute.xlu0 %1137
    %1139 = vrot.lane.b32.xlu0 %v275, 72
    %v1140 = vpop.permute.xlu0 %1139
    %v1141 = vsel %vm290, %v1134, 0
    %v1143 = vsel %vm290, %v1136, 0
    %v1145 = vsel %vm290, %v1138, 0
    %v1147 = vsel %vm290, %v1140, 0
    %1149 = vmatprep.subr.mxu0 0.0
    %1150 = vmatpush1.xpose.msra.mxu0 %v1145
    %1151 = vmatprep.subr.mxu0 0.0
    %1152 = vmatpush1.xpose.msra.mxu0 %v1147
    %1153 = vmatprep.subr.mxu0 0.0
    %1154 = vmatpush1.xpose.msra.mxu0 0.0
    %1155 = vmatprep.subr.mxu0 0.0
    %1156 = vmatpush1.xpose.msra.mxu0 0.0
    %1157 = vmatprep.subr.mxu0 0.0
    %1158 = vmatpush1.xpose.msra.mxu0 0.0
    %1159 = vmatprep.subr.mxu0 0.0
    %1160 = vmatpush1.xpose.msra.mxu0 0.0
    %1161 = vmatprep.subr.mxu0 0.0
    %1162 = vmatpush1.xpose.msra.mxu0 0.0
    %1163 = vmatprep.subr.mxu0 0.0
    %1164 = vmatpush1.xpose.msra.mxu0 0.0
    %1165 = vmatprep.subr.mxu0 0.0
    %1166 = vmatpush1.xpose.msra.mxu0 0.0
    %1167 = vmatprep.subr.mxu0 0.0
    %1168 = vmatpush1.xpose.msra.mxu0 0.0
    %1169 = vmatprep.subr.mxu0 0.0
    %1170 = vmatpush1.xpose.msra.mxu0 0.0
    %1171 = vmatprep.subr.mxu0 0.0
    %1172 = vmatpush1.xpose.msra.mxu0 0.0
    %1173 = vmatprep.subr.mxu0 0.0
    %1174 = vmatpush1.xpose.msra.mxu0 0.0
    %1175 = vmatprep.subr.mxu0 0.0
    %1176 = vmatpush1.xpose.msra.mxu0 0.0
    %1177 = vmatprep.subr.mxu0 0.0
    %1178 = vmatpush1.xpose.msra.mxu0 0.0
    %1179 = vmatprep.subr.mxu0 0.0
    %1180 = vmatpush1.xpose.msra.mxu0 0.0
    %1181 = vmatprep.subr.mxu0 0.0
    %1182 = vmatpush1.xpose.msra.mxu0 0.0
    %1183 = vmatprep.subr.mxu0 0.0
    %1184 = vmatpush1.xpose.msra.mxu0 0.0
    %1185 = vmatprep.subr.mxu0 0.0
    %1186 = vmatpush1.xpose.msra.mxu0 0.0
    %1187 = vmatprep.subr.mxu0 0.0
    %1188 = vmatpush1.xpose.msra.mxu0 0.0
    %1189 = vmatprep.subr.mxu0 0.0
    %1190 = vmatpush1.xpose.msra.mxu0 0.0
    %1191 = vmatprep.subr.mxu0 0.0
    %1192 = vmatpush1.xpose.msra.mxu0 0.0
    %1193 = vmatprep.subr.mxu0 0.0
    %1194 = vmatpush1.xpose.msra.mxu0 0.0
    %1195 = vmatprep.subr.mxu0 0.0
    %1196 = vmatpush1.xpose.msra.mxu0 0.0
    %1197 = vmatprep.subr.mxu0 0.0
    %1198 = vmatpush1.xpose.msra.mxu0 0.0
    %1199 = vmatprep.subr.mxu0 0.0
    %1200 = vmatpush1.xpose.msra.mxu0 0.0
    %1201 = vmatprep.subr.mxu0 0.0
    %1202 = vmatpush1.xpose.msra.mxu0 0.0
    %1203 = vmatprep.subr.mxu0 0.0
    %1204 = vmatpush1.xpose.msra.mxu0 0.0
    %1205 = vmatprep.subr.mxu0 0.0
    %1206 = vmatpush1.xpose.msra.mxu0 0.0
    %1207 = vmatprep.subr.mxu0 0.0
    %1208 = vmatpush1.xpose.msra.mxu0 0.0
    %1209 = vmatprep.subr.mxu0 0.0
    %1210 = vmatpush1.xpose.msra.mxu0 0.0
    %1211 = vmatprep.subr.mxu0 0.0
    %1212 = vmatpush1.xpose.msra.mxu0 0.0
    %1213 = vmatprep.mubr.f32.mxu0 0.0
    %1214 = vmatmul.mubr.f32.gmra.mrb[0].mxu0 %v1141
    %v1215 = vpop.f32.mrb[0].mxu0
    %v1216 = vadd.f32 %v278, %v1215
    %v1217 = vpop.f32.mrb[0].mxu0
    %1218 = vmatprep.mubr.f32.mxu0 0.0
    %1219 = vmatmul.mubr.f32.gmra.mrb[0].mxu0 %v1143
    %v1220 = vpop.f32.mrb[0].mxu0
    %v1221 = vadd.f32 %v279, %v1220
    %v1222 = vpop.f32.mrb[0].mxu0
    %1223 = vdwg.mxu0
    %v1224 = vsel %vm376, %v1216, -inf
    %1225 = vmax.xlane.f32.xlu0 %v1224
    %v1226 = vpop.xlane.xlu0 %1225
    %v1227 = vsel %vm376, %v1221, -inf
    %1228 = vmax.xlane.f32.xlu0 %v1227
    %v1229 = vpop.xlane.xlu0 %1228
    %v1230 = vsub.f32 %v1216, %v1226
    %v1231 = vsub.f32 %v1221, %v1229
    %v1232 = vmul.f32 %v1230, 1.442695
    %v1233 = vpow.pop %v1232
    %v1234 = vmul.f32 %v1231, 1.442695
    %v1235 = vpow.pop %v1234
    %v1236 = vsel %vm376, %v1233, 0.0
    %1237 = vadd.xlane.f32.xlu0 %v1236
    %v1238 = vpop.xlane.xlu0 %1237
    %v1239 = vsel %vm376, %v1235, 0.0
    %1240 = vadd.xlane.f32.xlu0 %v1239
    %v1241 = vpop.xlane.xlu0 %1240
    %v1242 = vrcp.pop %v1238
    %v1243 = vrcp.pop %v1241
    %v1244 = vmul.f32 %v1233, %v1242
    %v1245 = vmul.f32 %v1235, %v1243
    %1246 = vrot.lane.b32.xlu0 %v276, 40
    %v1247 = vpop.permute.xlu0 %1246
    %1248 = vrot.lane.b32.xlu0 %v277, 40
    %v1249 = vpop.permute.xlu0 %1248
    %v1253 = vsel %vm376, %v1244, 0
    %v1256 = vsel %vm376, %v1245, 0
    %1258 = vmatprep.subr.mxu0 0.0
    %1259 = vmatpush1.msra.mxu0 %v1247
    %1260 = vmatprep.subr.mxu0 0.0
    %1261 = vmatpush1.msra.mxu0 %v1249
    %1262 = vmatprep.subr.mxu0 0.0
    %1263 = vmatpush1.msra.mxu0 0.0
    %1264 = vmatprep.subr.mxu0 0.0
    %1265 = vmatpush1.msra.mxu0 0.0
    %1266 = vmatprep.subr.mxu0 0.0
    %1267 = vmatpush1.msra.mxu0 0.0
    %1268 = vmatprep.subr.mxu0 0.0
    %1269 = vmatpush1.msra.mxu0 0.0
    %1270 = vmatprep.subr.mxu0 0.0
    %1271 = vmatpush1.msra.mxu0 0.0
    %1272 = vmatprep.subr.mxu0 0.0
    %1273 = vmatpush1.msra.mxu0 0.0
    %1274 = vmatprep.subr.mxu0 0.0
    %1275 = vmatpush1.msra.mxu0 0.0
    %1276 = vmatprep.subr.mxu0 0.0
    %1277 = vmatpush1.msra.mxu0 0.0
    %1278 = vmatprep.subr.mxu0 0.0
    %1279 = vmatpush1.msra.mxu0 0.0
    %1280 = vmatprep.subr.mxu0 0.0
    %1281 = vmatpush1.msra.mxu0 0.0
    %1282 = vmatprep.subr.mxu0 0.0
    %1283 = vmatpush1.msra.mxu0 0.0
    %1284 = vmatprep.subr.mxu0 0.0
    %1285 = vmatpush1.msra.mxu0 0.0
    %1286 = vmatprep.subr.mxu0 0.0
    %1287 = vmatpush1.msra.mxu0 0.0
    %1288 = vmatprep.subr.mxu0 0.0
    %1289 = vmatpush1.msra.mxu0 0.0
    %1290 = vmatprep.subr.mxu0 0.0
    %1291 = vmatpush1.msra.mxu0 0.0
    %1292 = vmatprep.subr.mxu0 0.0
    %1293 = vmatpush1.msra.mxu0 0.0
    %1294 = vmatprep.subr.mxu0 0.0
    %1295 = vmatpush1.msra.mxu0 0.0
    %1296 = vmatprep.subr.mxu0 0.0
    %1297 = vmatpush1.msra.mxu0 0.0
    %1298 = vmatprep.subr.mxu0 0.0
    %1299 = vmatpush1.msra.mxu0 0.0
    %1300 = vmatprep.subr.mxu0 0.0
    %1301 = vmatpush1.msra.mxu0 0.0
    %1302 = vmatprep.subr.mxu0 0.0
    %1303 = vmatpush1.msra.mxu0 0.0
    %1304 = vmatprep.subr.mxu0 0.0
    %1305 = vmatpush1.msra.mxu0 0.0
    %1306 = vmatprep.subr.mxu0 0.0
    %1307 = vmatpush1.msra.mxu0 0.0
    %1308 = vmatprep.subr.mxu0 0.0
    %1309 = vmatpush1.msra.mxu0 0.0
    %1310 = vmatprep.subr.mxu0 0.0
    %1311 = vmatpush1.msra.mxu0 0.0
    %1312 = vmatprep.subr.mxu0 0.0
    %1313 = vmatpush1.msra.mxu0 0.0
    %1314 = vmatprep.subr.mxu0 0.0
    %1315 = vmatpush1.msra.mxu0 0.0
    %1316 = vmatprep.subr.mxu0 0.0
    %1317 = vmatpush1.msra.mxu0 0.0
    %1318 = vmatprep.subr.mxu0 0.0
    %1319 = vmatpush1.msra.mxu0 0.0
    %1320 = vmatprep.subr.mxu0 0.0
    %1321 = vmatpush1.msra.mxu0 0.0
    %1322 = vmatprep.mubr.f32.mxu0 0.0
    %1323 = vmatmul.mubr.f32.gmra.mrb[0].mxu0 %v1253
    %v1324 = vpop.f32.mrb[0].mxu0
    %v1325 = vadd.f32 0.0, %v1324
    %v1326 = vpop.f32.mrb[0].mxu0
    %1327 = vmatprep.mubr.f32.mxu0 0.0
    %1328 = vmatmul.mubr.f32.gmra.mrb[0].mxu0 %v1256
    %v1329 = vpop.f32.mrb[0].mxu0
    %v1330 = vadd.f32 0.0, %v1329
    %v1331 = vpop.f32.mrb[0].mxu0
    %1332 = vdwg.mxu0
    %v1334 = vsel %vm290, %v1325, 0
    %v1337 = vsel %vm290, %v1330, 0
    %1339 = vmatprep.subr.mxu0 0.0
    %1340 = vmatpush1.msra.mxu0 %v283
    %1341 = vmatprep.subr.mxu0 0.0
    %1342 = vmatpush1.msra.mxu0 0.0
    %1343 = vmatprep.subr.mxu0 0.0
    %1344 = vmatpush1.msra.mxu0 0.0
    %1345 = vmatprep.subr.mxu0 0.0
    %1346 = vmatpush1.msra.mxu0 0.0
    %1347 = vmatprep.subr.mxu0 0.0
    %1348 = vmatpush1.msra.mxu0 0.0
    %1349 = vmatprep.subr.mxu0 0.0
    %1350 = vmatpush1.msra.mxu0 0.0
    %1351 = vmatprep.subr.mxu0 0.0
    %1352 = vmatpush1.msra.mxu0 0.0
    %1353 = vmatprep.subr.mxu0 0.0
    %1354 = vmatpush1.msra.mxu0 0.0
    %1355 = vmatprep.subr.mxu0 0.0
    %1356 = vmatpush1.msra.mxu0 0.0
    %1357 = vmatprep.subr.mxu0 0.0
    %1358 = vmatpush1.msra.mxu0 0.0
    %1359 = vmatprep.subr.mxu0 0.0
    %1360 = vmatpush1.msra.mxu0 0.0
    %1361 = vmatprep.subr.mxu0 0.0
    %1362 = vmatpush1.msra.mxu0 0.0
    %1363 = vmatprep.subr.mxu0 0.0
    %1364 = vmatpush1.msra.mxu0 0.0
    %1365 = vmatprep.subr.mxu0 0.0
    %1366 = vmatpush1.msra.mxu0 0.0
    %1367 = vmatprep.subr.mxu0 0.0
    %1368 = vmatpush1.msra.mxu0 0.0
    %1369 = vmatprep.subr.mxu0 0.0
    %1370 = vmatpush1.msra.mxu0 0.0
    %1371 = vmatprep.subr.mxu0 0.0
    %1372 = vmatpush1.msra.mxu0 0.0
    %1373 = vmatprep.subr.mxu0 0.0
    %1374 = vmatpush1.msra.mxu0 0.0
    %1375 = vmatprep.subr.mxu0 0.0
    %1376 = vmatpush1.msra.mxu0 0.0
    %1377 = vmatprep.subr.mxu0 0.0
    %1378 = vmatpush1.msra.mxu0 0.0
    %1379 = vmatprep.subr.mxu0 0.0
    %1380 = vmatpush1.msra.mxu0 0.0
    %1381 = vmatprep.subr.mxu0 0.0
    %1382 = vmatpush1.msra.mxu0 0.0
    %1383 = vmatprep.subr.mxu0 0.0
    %1384 = vmatpush1.msra.mxu0 0.0
    %1385 = vmatprep.subr.mxu0 0.0
    %1386 = vmatpush1.msra.mxu0 0.0
    %1387 = vmatprep.subr.mxu0 0.0
    %1388 = vmatpush1.msra.mxu0 0.0
    %1389 = vmatprep.subr.mxu0 0.0
    %1390 = vmatpush1.msra.mxu0 0.0
    %1391 = vmatprep.subr.mxu0 0.0
    %1392 = vmatpush1.msra.mxu0 0.0
    %1393 = vmatprep.subr.mxu0 0.0
    %1394 = vmatpush1.msra.mxu0 0.0
    %1395 = vmatprep.subr.mxu0 0.0
    %1396 = vmatpush1.msra.mxu0 0.0
    %1397 = vmatprep.subr.mxu0 0.0
    %1398 = vmatpush1.msra.mxu0 0.0
    %1399 = vmatprep.subr.mxu0 0.0
    %1400 = vmatpush1.msra.mxu0 0.0
    %1401 = vmatprep.subr.mxu0 0.0
    %1402 = vmatpush1.msra.mxu0 0.0
    %1403 = vmatprep.mubr.f32.mxu0 0.0
    %1404 = vmatmul.mubr.f32.gmra.mrb[0].mxu0 %v1334
    %v1405 = vpop.f32.mrb[0].mxu0
    %v1406 = vadd.f32 0.0, %v1405
    %v1407 = vpop.f32.mrb[0].mxu0
    %1408 = vmatprep.mubr.f32.mxu0 0.0
    %1409 = vmatmul.mubr.f32.gmra.mrb[0].mxu0 %v1337
    %v1410 = vpop.f32.mrb[0].mxu0
    %v1411 = vadd.f32 0.0, %v1410
    %v1412 = vpop.f32.mrb[0].mxu0
    %1413 = vdwg.mxu0
    %v1414 = vadd.f32 %v1131, %v1406
    %v1415 = vadd.f32 %v1132, %v1411
    %v1416 = vadd.f32 %v82, %v1414
    %v1417 = vadd.f32 %v83, %v1415
    %v1418 = vld [vmem:[%s9] sm:$0x1]
    %v1420 = vlaneseq
    %v1421 = vshrl.u32 %v1420, 7
    %v1422 = vsub.s32 0, %v1421
    %v1423 = vrot.slane %v1418, %v1422
    %v1425 = vadd.f32 %v1416, %v1423
    %v1426 = vadd.f32 %v1417, %v1423
    %1427 = vst.msk [vmem:[#allocation2] sm:$0xff] %vm40, %v1425
    %1428 = vst.msk [vmem:[#allocation2 + $0x8] sm:$0xff] %vm40, %v1426
    // Predicated region
    $region42: #{transformer_block.1} parent=1 // pred_check
      _
    $region43: #{transformer_block.1} parent=1 // pred_check_branch
      %1430 = sbr.rel (0) target = $region45
    $region44: #{transformer_block.1} parent=1 // pred_region
      %s1432 = ssub.s32 256, 256
      %1433 = vsyncadd [#allocation3], %s1432
      %s1434 = sshll.u32 [#allocation2], 4
      %s1435 = int_to_ptr.vmem [resolvable:$true] %s1434
      %1440 = dma.vmem_to_hbm [thread:$0]  %s1435, 256, %s10, [#allocation3], 128, 128, 8
    $region45: #{transformer_block.1} parent=1 // pred_fallthru
      _
    // Predicated region
    $region46: #{transformer_block.1} parent=1 // pred_check
      _
    $region47: #{transformer_block.1} parent=1 // pred_check_branch
      %1442 = sbr.rel (0) target = $region49
    $region48: #{transformer_block.1} parent=1 // pred_region
      %1443 = dma.done [#allocation3], 256
    $region49: #{transformer_block.1} parent=1 // pred_fallthru
      _
    %1444 = vsyncpa [#allocation3], 1

</llo_original>
